<compile_context>
chip_gen: v7x
topology: tpu7x:2x2x1
jax: 0.10.0
libtpu: 0.0.40
codegen_flags: <defaults>
</compile_context>

<pallas_src>
import jax
import jax.numpy as jnp
from jax.experimental import pallas as pl
from jax.experimental.pallas import tpu as pltpu


# ----------------------------- Pallas kernel --------------------------------
def _decoder_stage_kernel(x_ref, uh_ref, uw_ref, w_ref, b_ref, o_ref):
    # x_ref : (1, H, W*C_in)    bf16  full input feature map for one batch element
    # uh_ref: (TH, H)           bf16  rows of the H-axis interpolation matrix for this tile
    # uw_ref: (Wo, W)           bf16  W-axis interpolation matrix
    # w_ref : (C_in, C_out)     bf16  1x1 conv weight (transposed)
    # b_ref : (1, C_out)        f32   conv bias
    # o_ref : (1, TH*Wo, C_out) bf16  output rows ho in [t*TH, (t+1)*TH), NHWC-flattened
    th, h = uh_ref.shape
    wo, w = uw_ref.shape
    c_in = w_ref.shape[0]

    x = x_ref[0]                                                      # (H, W*C_in)

    # H-axis upsample: one 2-D MXU matmul, K = H.
    y1 = jnp.dot(uh_ref[...], x, preferred_element_type=jnp.float32)  # (TH, W*C_in) f32
    y1 = y1.astype(jnp.bfloat16).reshape(th, w, c_in)                 # (TH, W, C_in)

    # W-axis upsample: batched matmul over the TH tile rows, K = W, C_in in lanes.
    uw_b = jnp.broadcast_to(uw_ref[...], (th, wo, w))                 # (TH, Wo, W)
    y2 = jnp.einsum("tow,twc->toc", uw_b, y1,
                    preferred_element_type=jnp.float32)               # (TH, Wo, C_in) f32
    y2 = y2.astype(jnp.bfloat16).reshape(th * wo, c_in)               # (TH*Wo, C_in)

    # 1x1 conv: dominant lane-dense matmul (N = C_out); bias added in f32.
    out = jnp.dot(y2, w_ref[...], preferred_element_type=jnp.float32) + b_ref[...]
    o_ref[0] = out.astype(o_ref.dtype)


# ------------------------------- JAX glue ------------------------------------
def _bilinear_matrix(n_in, n_out):
    """Dense (n_out, n_in) 1-D bilinear interpolation matrix, align_corners=True."""
    dst = jnp.arange(n_out, dtype=jnp.float32)
    if n_out > 1:
        src = dst * (n_in - 1) / (n_out - 1)
    else:
        src = jnp.zeros_like(dst)
    i0 = jnp.clip(jnp.floor(src), 0, n_in - 1).astype(jnp.int32)
    i1 = jnp.clip(i0 + 1, 0, n_in - 1)
    frac = src - i0.astype(jnp.float32)
    m = (jax.nn.one_hot(i0, n_in, dtype=jnp.float32) * (1.0 - frac)[:, None]
         + jax.nn.one_hot(i1, n_in, dtype=jnp.float32) * frac[:, None])
    return m


def _pick_row_tile(h_out, w_out, c_in, c_out, budget_bytes=2 << 20):
    """Largest divisor of h_out (multiple of 16, or h_out itself) whose per-tile
    working-set estimate (double-buffered bf16 out + f32 accum + intermediates)
    stays under budget_bytes."""
    def tile_bytes(th):
        rows = th * w_out
        return rows * (c_out * (2 * 2 + 4) + c_in * (4 + 2 + 2))
    cands = [d for d in range(h_out, 0, -1)
             if h_out % d == 0 and (d % 16 == 0 or d == h_out)]
    for th in cands:
        if tile_bytes(th) <= budget_bytes:
            return th
    return cands[-1]


def segformer_decoder_block(x, conv_w, conv_b, scale_factor):
    """One decoder stage: bilinear upsample (align_corners=True) then 1x1 conv.

    x:      (B, C_in, H, W) float32
    conv_w: (C_out, C_in, 1, 1) float32
    conv_b: (C_out,) float32
    returns (B, C_out, H*scale, W*scale) bfloat16 (channels-first)
    """
    B, C_in, H, W = x.shape
    C_out = conv_w.shape[0]
    Ho, Wo = H * scale_factor, W * scale_factor
    TH = _pick_row_tile(Ho, Wo, C_in, C_out)

    # Small 1-D interpolation matrices (KiB) instead of the dense kron (MiB+).
    uh = _bilinear_matrix(H, Ho).astype(jnp.bfloat16)                 # (Ho, H)
    uw = _bilinear_matrix(W, Wo).astype(jnp.bfloat16)                 # (Wo, W)

    # Layout plumbing only (no compute): NCHW -> channels-last (B, H, W*C_in).
    x_seq = jnp.transpose(x, (0, 2, 3, 1)).reshape(B, H, W * C_in).astype(jnp.bfloat16)
    w_t = conv_w.reshape(C_out, C_in).T.astype(jnp.bfloat16)          # (C_in, C_out)
    bias = conv_b.reshape(1, C_out).astype(jnp.float32)

    out_seq = pl.pallas_call(
        _decoder_stage_kernel,
        out_shape=jax.ShapeDtypeStruct((B, Ho * Wo, C_out), jnp.bfloat16),
        grid_spec=pl.GridSpec(
            grid=(B, Ho // TH),                      # t innermost: x stays resident per batch
            in_specs=[
                pl.BlockSpec((1, H, W * C_in), lambda b, t: (b, 0, 0)),
                pl.BlockSpec((TH, H), lambda b, t: (t, 0)),
                pl.BlockSpec((Wo, W), lambda b, t: (0, 0)),
                pl.BlockSpec((C_in, C_out), lambda b, t: (0, 0)),
                pl.BlockSpec((1, C_out), lambda b, t: (0, 0)),
            ],
            out_specs=pl.BlockSpec((1, TH * Wo, C_out), lambda b, t: (b, t, 0)),
        ),
        compiler_params=pltpu.CompilerParams(
            dimension_semantics=("parallel", "parallel"),
            vmem_limit_bytes=32 * 1024 * 1024,
        ),
    )(x_seq, uh, uw, w_t, bias)

    # Back to NCHW (pure layout, done by XLA outside the kernel); stays bf16 —
    # cast to f32 in the caller only if strictly required downstream.
    return out_seq.reshape(B, Ho, Wo, C_out).transpose(0, 3, 1, 2)


def segformer_decoder(features, stage_params):
    """Mirrors SegFormerDecoder.forward: one (upsample + 1x1 conv) stage per feature."""
    return [segformer_decoder_block(f, p["w"], p["b"], p["scale"])
            for f, p in zip(features, stage_params)]


# --------------------------- pure-JAX reference -------------------------------
def _reference_block(x, conv_w, conv_b, scale):
    """Gather-based bilinear (align_corners=True) + 1x1 conv, matching torch."""
    B, C, H, W = x.shape
    Ho, Wo = H * scale, W * scale
    ys = (jnp.arange(Ho, dtype=jnp.float32) * (H - 1) / (Ho - 1)
          if Ho > 1 else jnp.zeros((Ho,), jnp.float32))
    xs = (jnp.arange(Wo, dtype=jnp.float32) * (W - 1) / (Wo - 1)
          if Wo > 1 else jnp.zeros((Wo,), jnp.float32))
    y0 = jnp.clip(jnp.floor(ys), 0, H - 1).astype(jnp.int32)
    y1 = jnp.clip(y0 + 1, 0, H - 1)
    x0 = jnp.clip(jnp.floor(xs), 0, W - 1).astype(jnp.int32)
    x1 = jnp.clip(x0 + 1, 0, W - 1)
    fy = (ys - y0.astype(jnp.float32))[:, None]
    fx = (xs - x0.astype(jnp.float32))[None, :]
    v00 = x[:, :, y0[:, None], x0[None, :]]
    v01 = x[:, :, y0[:, None], x1[None, :]]
    v10 = x[:, :, y1[:, None], x0[None, :]]
    v11 = x[:, :, y1[:, None], x1[None, :]]
    up = (v00 * (1 - fy) * (1 - fx) + v01 * (1 - fy) * fx
          + v10 * fy * (1 - fx) + v11 * fy * fx)                      # (B, C, Ho, Wo)
    w2 = conv_w.reshape(conv_w.shape[0], C)
    return jnp.einsum('bchw,dc->bdhw', up, w2) + conv_b[None, :, None, None]


# ---------------------------------- demo --------------------------------------
if __name__ == "__main__":
    key = jax.random.PRNGKey(0)
    ks = jax.random.split(key, 8)

    B = 2
    out_channels = 256           # fills the 256-wide MXU on v6e/v7x; lane-dense everywhere
    widths = [32, 64]
    spatial = [(16, 16), (8, 8)]
    scale_factors = [2, 4]       # both stages upsample to 32x32

    features = [
        jax.random.normal(ks[0], (B, widths[0], *spatial[0]), jnp.float32),
        jax.random.normal(ks[1], (B, widths[1], *spatial[1]), jnp.float32),
    ]
    stage_params = [
        {"w": jax.random.normal(ks[2], (out_channels, widths[0], 1, 1), jnp.float32) * 0.1,
         "b": jax.random.normal(ks[3], (out_channels,), jnp.float32) * 0.1,
         "scale": scale_factors[0]},
        {"w": jax.random.normal(ks[4], (out_channels, widths[1], 1, 1), jnp.float32) * 0.1,
         "b": jax.random.normal(ks[5], (out_channels,), jnp.float32) * 0.1,
         "scale": scale_factors[1]},
    ]

    outs = segformer_decoder(features, stage_params)
    outs = jax.block_until_ready(outs)

    for f, p, (hh, ww), s, o in zip(features, stage_params, spatial, scale_factors, outs):
        ref = _reference_block(f, p["w"], p["b"], p["scale"])
        assert o.shape == (B, out_channels, hh * s, ww * s), o.shape
        # bf16 MXU operands + bf16 output with f32 accumulation -> ~1e-2 level agreement.
        assert jnp.allclose(o.astype(jnp.float32), ref, rtol=3e-2, atol=3e-2), \
            "mismatch vs reference"

    print("KERNEL_OK")
</pallas_src>

<mosaic_0001>
module attributes {stable_mosaic.version = 11 : i64} {
  func.func @_decoder_stage_kernel(%arg0: i32, %arg1: i32, %arg2: memref<1x16x512xbf16, #tpu.memory_space<vmem>>, %arg3: memref<16x16xbf16, #tpu.memory_space<vmem>>, %arg4: memref<32x16xbf16, #tpu.memory_space<vmem>>, %arg5: memref<32x256xbf16, #tpu.memory_space<vmem>>, %arg6: memref<1x256xf32, #tpu.memory_space<vmem>>, %arg7: memref<1x512x256xbf16, #tpu.memory_space<vmem>>) attributes {dimension_semantics = [#tpu.dimension_semantics<parallel>, #tpu.dimension_semantics<parallel>], iteration_bounds = array<i64: 2, 2>, scalar_prefetch = 0 : i64, scratch_operands = 0 : i64, tpu.core_type = #tpu.core_type<tc>, window_params = [{transform_indices = @transform_0, window_bounds = array<i64: 1, 16, 512>}, {transform_indices = @transform_1, window_bounds = array<i64: 16, 16>}, {pipeline_mode = #tpu.pipeline_mode<synchronous>, transform_indices = @transform_2, window_bounds = array<i64: 32, 16>}, {pipeline_mode = #tpu.pipeline_mode<synchronous>, transform_indices = @transform_3, window_bounds = array<i64: 32, 256>}, {pipeline_mode = #tpu.pipeline_mode<synchronous>, transform_indices = @transform_4, window_bounds = array<i64: 1, 256>}, {transform_indices = @transform_5, window_bounds = array<i64: 1, 512, 256>}]} {
    %c0 = arith.constant 0 : index
    %c0_0 = arith.constant 0 : index
    %c0_1 = arith.constant 0 : index
    %0 = vector.load %arg2[%c0, %c0_0, %c0_1] : memref<1x16x512xbf16, #tpu.memory_space<vmem>>, vector<1x16x512xbf16>
    %1 = vector.shape_cast %0 : vector<1x16x512xbf16> to vector<16x512xbf16>
    %c0_2 = arith.constant 0 : index
    %c0_3 = arith.constant 0 : index
    %2 = vector.load %arg3[%c0_2, %c0_3] : memref<16x16xbf16, #tpu.memory_space<vmem>>, vector<16x16xbf16>
    %cst = arith.constant dense<0.000000e+00> : vector<16x512xf32>
    %3 = tpu.matmul %2, %1, %cst {dimension_numbers = #tpu.dot_dimension_numbers<[1], [0], [0], [1], [0, 0, 1, 1], [], []>} : vector<16x16xbf16>, vector<16x512xbf16>, vector<16x512xf32> -> vector<16x512xf32>
    %4 = arith.truncf %3 : vector<16x512xf32> to vector<16x512xbf16>
    %5 = vector.shape_cast %4 : vector<16x512xbf16> to vector<16x16x32xbf16>
    %c0_4 = arith.constant 0 : index
    %c0_5 = arith.constant 0 : index
    %6 = vector.load %arg4[%c0_4, %c0_5] : memref<32x16xbf16, #tpu.memory_space<vmem>>, vector<32x16xbf16>
    %7 = vector.shape_cast %6 : vector<32x16xbf16> to vector<1x32x16xbf16>
    %8 = vector.broadcast %7 : vector<1x32x16xbf16> to vector<16x32x16xbf16>
    "tpu.trace_start"() <{level = 10 : i32, message = "tow,twc->toc"}> : () -> ()
    %cst_6 = arith.constant dense<0.000000e+00> : vector<16x32x32xf32>
    %9 = tpu.matmul %8, %5, %cst_6 {dimension_numbers = #tpu.dot_dimension_numbers<[2], [1], [1], [2], [0, 0, 0, 1, 1, 2], [0], [0]>} : vector<16x32x16xbf16>, vector<16x16x32xbf16>, vector<16x32x32xf32> -> vector<16x32x32xf32>
    "tpu.trace_stop"() : () -> ()
    %10 = arith.truncf %9 : vector<16x32x32xf32> to vector<16x32x32xbf16>
    %11 = vector.shape_cast %10 : vector<16x32x32xbf16> to vector<512x32xbf16>
    %c0_7 = arith.constant 0 : index
    %c0_8 = arith.constant 0 : index
    %12 = vector.load %arg5[%c0_7, %c0_8] : memref<32x256xbf16, #tpu.memory_space<vmem>>, vector<32x256xbf16>
    %cst_9 = arith.constant dense<0.000000e+00> : vector<512x256xf32>
    %13 = tpu.matmul %11, %12, %cst_9 {dimension_numbers = #tpu.dot_dimension_numbers<[1], [0], [0], [1], [0, 0, 1, 1], [], []>} : vector<512x32xbf16>, vector<32x256xbf16>, vector<512x256xf32> -> vector<512x256xf32>
    %c0_10 = arith.constant 0 : index
    %c0_11 = arith.constant 0 : index
    %14 = vector.load %arg6[%c0_10, %c0_11] : memref<1x256xf32, #tpu.memory_space<vmem>>, vector<1x256xf32>
    %15 = vector.broadcast %14 : vector<1x256xf32> to vector<512x256xf32>
    %16 = arith.addf %13, %15 : vector<512x256xf32>
    %17 = arith.truncf %16 : vector<512x256xf32> to vector<512x256xbf16>
    %c0_12 = arith.constant 0 : index
    %c0_13 = arith.constant 0 : index
    %c0_14 = arith.constant 0 : index
    %18 = vector.load %arg7[%c0_12, %c0_13, %c0_14] : memref<1x512x256xbf16, #tpu.memory_space<vmem>>, vector<1x512x256xbf16>
    %19 = vector.shape_cast %18 : vector<1x512x256xbf16> to vector<512x256xbf16>
    %20 = vector.shape_cast %17 : vector<512x256xbf16> to vector<1x512x256xbf16>
    tpu.vector_store %arg7[%c0_12, %c0_13, %c0_14], %20 {strides = array<i32>} : memref<1x512x256xbf16, #tpu.memory_space<vmem>>, vector<1x512x256xbf16>,
    return
  }
  func.func @transform_0(%arg0: i32, %arg1: i32) -> (i32, i32, i32) {
    %c0_i32 = arith.constant 0 : i32
    %c0_i32_0 = arith.constant 0 : i32
    %c0_i32_1 = arith.constant 0 : i32
    return %arg0, %c0_i32, %c0_i32_0 : i32, i32, i32
  }
  func.func @transform_1(%arg0: i32, %arg1: i32) -> (i32, i32) {
    %c0_i32 = arith.constant 0 : i32
    %c0_i32_0 = arith.constant 0 : i32
    return %arg1, %c0_i32 : i32, i32
  }
  func.func @transform_2(%arg0: i32, %arg1: i32) -> (i32, i32) {
    %c0_i32 = arith.constant 0 : i32
    %c0_i32_0 = arith.constant 0 : i32
    %c0_i32_1 = arith.constant 0 : i32
    return %c0_i32, %c0_i32_0 : i32, i32
  }
  func.func @transform_3(%arg0: i32, %arg1: i32) -> (i32, i32) {
    %c0_i32 = arith.constant 0 : i32
    %c0_i32_0 = arith.constant 0 : i32
    %c0_i32_1 = arith.constant 0 : i32
    return %c0_i32, %c0_i32_0 : i32, i32
  }
  func.func @transform_4(%arg0: i32, %arg1: i32) -> (i32, i32) {
    %c0_i32 = arith.constant 0 : i32
    %c0_i32_0 = arith.constant 0 : i32
    %c0_i32_1 = arith.constant 0 : i32
    return %c0_i32, %c0_i32_0 : i32, i32
  }
  func.func @transform_5(%arg0: i32, %arg1: i32) -> (i32, i32, i32) {
    %c0_i32 = arith.constant 0 : i32
    %c0_i32_0 = arith.constant 0 : i32
    return %arg0, %arg1, %c0_i32 : i32, i32, i32
  }
}

</mosaic_0001>

<llo_original>
// kernel: tpu_custom_call.1
$region0: #{tpu_custom_call.1}
  #allocation0 [shape = 'u32[]', space=smem, size = 0x4, offset = 0x4, fixed_abs, tag = 'smem constant byte address 0x4 - core index']
  #allocation1 [shape = 'u32[144,128]{1,0:T(1,128)}', space=vmem, size = 0x12000, scoped, tag = 'internal scratch']
  %s0 = inlined_call_operand.hbm [shape: bf16[2,16,512], index: 0, kind: input, shape index: {}]
  %s1 = inlined_call_operand.vmem [shape: bf16[32,16], index: 1, kind: input, shape index: {}]
  %s2 = inlined_call_operand.vmem [shape: bf16[32,16], index: 2, kind: input, shape index: {}]
  %s3 = inlined_call_operand.vmem [shape: bf16[32,256], index: 3, kind: input, shape index: {}]
  %s4 = inlined_call_operand.vmem [shape: f32[1,256], index: 4, kind: input, shape index: {}]
  %s5 = inlined_call_operand.hbm [shape: bf16[2,1024,256], index: 5, kind: output, shape index: {}]
  %s6 = sld [smem:[#allocation0]]
  $region57: #{tpu_custom_call.1} parent=0
    _
  %s8 = ssub.s32 1, %s6
  %s9 = scalar_select 0, %s8, %s6
  $region1: #{tpu_custom_call.1} parent=0
    #allocation2 [shape = 'u8[32768]{0}', space=vmem, size = 0x8000, scoped, tag = 'input window, operand 0']
    #allocation3 [shape = 's32[2]{0}', space=sflag, size = 0x8, scoped, tag = 'scoped memory for tpu_custom_call.1']
    #allocation4 [shape = 's32[2]{0}', space=sflag, size = 0x8, scoped, tag = 'scoped memory for tpu_custom_call.1']
    #allocation5 [shape = 'u8[524288]{0}', space=vmem, size = 0x80000, scoped, tag = 'output window, operand 0']
    %10 = vsyncpa [#allocation3], 0
    %s11 = scalar_lea.sflag [#allocation3], 1
    %12 = vsyncpa %s11, 0
    %13 = vsyncpa [#allocation4], 0
    %s14 = scalar_lea.sflag [#allocation4], 1
    %15 = vsyncpa %s14, 0
    loop: start=0, step=1, limit=6
    $region2: #{tpu_custom_call.1} parent=1 // loop_pre_header
      _
    $region3: #{tpu_custom_call.1} parent=1 // loop_header
      %s17 = sphi 0, %s21
      %p18 = scmp.ge.s32.totalorder %s17, 6
      %s24 = sphi 0, %s36
      %s25 = sphi 0, %s32
      %s26 = sphi 0, %s24
      %s27 = sphi 0, %s25
      %s28 = sphi 0, %s26
      %s29 = sphi 0, %s27
      %s39 = sphi 0, %s41
      %s42 = sphi 0, %s39
      %s43 = sphi 0, %s42
      %s59 = sphi 0, %s43
      %s65 = sphi 0, %s67
      %s68 = sphi 0, %s65
      %s69 = sphi 0, %s68
      %s85 = sphi 0, %s69
      %s89 = sphi 0, %s89
      %s91 = sphi 0, %s89
      %s92 = sphi 0, %s91
      %s106 = sphi 0, %s92
      %s110 = sphi 0, %s110
      %s112 = sphi 0, %s110
      %s113 = sphi 0, %s112
      %s127 = sphi 0, %s113
      %s131 = sphi 0, %s131
      %s133 = sphi 0, %s131
      %s134 = sphi 0, %s133
      %s148 = sphi 0, %s134
      %s156 = sphi 0, %s158
      %s159 = sphi 0, %s156
      %s160 = sphi 0, %s159
      %s176 = sphi 0, %s160
    $region4: #{tpu_custom_call.1} parent=1 // loop_header_branch
      %20 = sbr.rel (%p18) target = $region8
    $region5: #{tpu_custom_call.1} parent=1 // loop_body
      %s22 = ssub.s32 %s17, 1
      %s23 = ssub.s32 %s17, 2
      %s30 = sadd.s32 1, %s25
      %p31 = scmp.ge.s32.totalorder %s30, 2
      %s32 = scalar_select %p31, 0, %s30
      %s33 = sadd.s32 1, %s24
      %s34 = scalar_select %p31, %s33, %s24
      %p35 = scmp.ge.s32.totalorder %s34, 2
      %s36 = scalar_select %p35, 0, %s34
      %s37 = ssub.s32 %s24, %s36
      %p38 = scmp.eq.s32.totalorder %s37, 0
      %s40 = sadd.s32 %s39, 1
      %s41 = scalar_select %p38, %s39, %s40
      %p44 = pneg %p38
      %p45 = scmp.eq.s32.totalorder %s17, 3
      %p46 = por %p44, %p45
      %p47 = scmp.ne.s32.totalorder %s39, %s42
      %p48 = scmp.eq.s32.totalorder %s17, 0
      %p49 = por %p47, %p48
      %p50 = scmp.ne.s32.totalorder %s39, %s42
      %p51 = scmp.eq.s32.totalorder %s22, 3
      %p52 = por %p50, %p51
      %p53 = scmp.ne.s32.totalorder %s42, %s43
      %p54 = scmp.eq.s32.totalorder %s22, 0
      %p55 = por %p53, %p54
      %p56 = scmp.ne.s32.totalorder %s42, %s43
      %p57 = scmp.eq.s32.totalorder %s23, 3
      %p58 = por %p56, %p57
      %p60 = scmp.ne.s32.totalorder %s43, %s59
      %p61 = scmp.eq.s32.totalorder %s23, 0
      %p62 = por %p60, %p61
      %s63 = ssub.s32 %s25, %s32
      %p64 = scmp.eq.s32.totalorder %s63, 0
      %s66 = sadd.s32 %s65, 1
      %s67 = scalar_select %p64, %s65, %s66
      %p70 = pneg %p64
      %p71 = scmp.eq.s32.totalorder %s17, 3
      %p72 = por %p70, %p71
      %p73 = scmp.ne.s32.totalorder %s65, %s68
      %p74 = scmp.eq.s32.totalorder %s17, 0
      %p75 = por %p73, %p74
      %p76 = scmp.ne.s32.totalorder %s65, %s68
      %p77 = scmp.eq.s32.totalorder %s22, 3
      %p78 = por %p76, %p77
      %p79 = scmp.ne.s32.totalorder %s68, %s69
      %p80 = scmp.eq.s32.totalorder %s22, 0
      %p81 = por %p79, %p80
      %p82 = scmp.ne.s32.totalorder %s68, %s69
      %p83 = scmp.eq.s32.totalorder %s23, 3
      %p84 = por %p82, %p83
      %p86 = scmp.ne.s32.totalorder %s69, %s85
      %p87 = scmp.eq.s32.totalorder %s23, 0
      %p88 = por %p86, %p87
      %s90 = sadd.s32 %s89, 1
      %p93 = scmp.eq.s32.totalorder %s17, 3
      %p94 = scmp.ne.s32.totalorder %s89, %s91
      %p95 = scmp.eq.s32.totalorder %s17, 0
      %p96 = por %p94, %p95
      %p97 = scmp.ne.s32.totalorder %s89, %s91
      %p98 = scmp.eq.s32.totalorder %s22, 3
      %p99 = por %p97, %p98
      %p100 = scmp.ne.s32.totalorder %s91, %s92
      %p101 = scmp.eq.s32.totalorder %s22, 0
      %p102 = por %p100, %p101
      %p103 = scmp.ne.s32.totalorder %s91, %s92
      %p104 = scmp.eq.s32.totalorder %s23, 3
      %p105 = por %p103, %p104
      %p107 = scmp.ne.s32.totalorder %s92, %s106
      %p108 = scmp.eq.s32.totalorder %s23, 0
      %p109 = por %p107, %p108
      %s111 = sadd.s32 %s110, 1
      %p114 = scmp.eq.s32.totalorder %s17, 3
      %p115 = scmp.ne.s32.totalorder %s110, %s112
      %p116 = scmp.eq.s32.totalorder %s17, 0
      %p117 = por %p115, %p116
      %p118 = scmp.ne.s32.totalorder %s110, %s112
      %p119 = scmp.eq.s32.totalorder %s22, 3
      %p120 = por %p118, %p119
      %p121 = scmp.ne.s32.totalorder %s112, %s113
      %p122 = scmp.eq.s32.totalorder %s22, 0
      %p123 = por %p121, %p122
      %p124 = scmp.ne.s32.totalorder %s112, %s113
      %p125 = scmp.eq.s32.totalorder %s23, 3
      %p126 = por %p124, %p125
      %p128 = scmp.ne.s32.totalorder %s113, %s127
      %p129 = scmp.eq.s32.totalorder %s23, 0
      %p130 = por %p128, %p129
      %s132 = sadd.s32 %s131, 1
      %p135 = scmp.eq.s32.totalorder %s17, 3
      %p136 = scmp.ne.s32.totalorder %s131, %s133
      %p137 = scmp.eq.s32.totalorder %s17, 0
      %p138 = por %p136, %p137
      %p139 = scmp.ne.s32.totalorder %s131, %s133
      %p140 = scmp.eq.s32.totalorder %s22, 3
      %p141 = por %p139, %p140
      %p142 = scmp.ne.s32.totalorder %s133, %s134
      %p143 = scmp.eq.s32.totalorder %s22, 0
      %p144 = por %p142, %p143
      %p145 = scmp.ne.s32.totalorder %s133, %s134
      %p146 = scmp.eq.s32.totalorder %s23, 3
      %p147 = por %p145, %p146
      %p149 = scmp.ne.s32.totalorder %s134, %s148
      %p150 = scmp.eq.s32.totalorder %s23, 0
      %p151 = por %p149, %p150
      %s152 = ssub.s32 %s24, %s36
      %s153 = ssub.s32 %s25, %s32
      %s154 = sor.u32 %s152, %s153
      %p155 = scmp.eq.s32.totalorder %s154, 0
      %s157 = sadd.s32 %s156, 1
      %s158 = scalar_select %p155, %s156, %s157
      %p161 = pneg %p155
      %p162 = scmp.eq.s32.totalorder %s17, 3
      %p163 = por %p161, %p162
      %p164 = scmp.ne.s32.totalorder %s156, %s159
      %p165 = scmp.eq.s32.totalorder %s17, 0
      %p166 = por %p164, %p165
      %p167 = scmp.ne.s32.totalorder %s156, %s159
      %p168 = scmp.eq.s32.totalorder %s22, 3
      %p169 = por %p167, %p168
      %p170 = scmp.ne.s32.totalorder %s159, %s160
      %p171 = scmp.eq.s32.totalorder %s22, 0
      %p172 = por %p170, %p171
      %p173 = scmp.ne.s32.totalorder %s159, %s160
      %p174 = scmp.eq.s32.totalorder %s23, 3
      %p175 = por %p173, %p174
      %p177 = scmp.ne.s32.totalorder %s160, %s176
      %p178 = scmp.eq.s32.totalorder %s23, 0
      %p179 = por %p177, %p178
      %p180 = scmp.le.s32.totalorder 1, %s17
      %p181 = scmp.lt.s32.totalorder %s17, 5
      %p182 = pnand %p180, %p181
      %p183 = pneg %p182
      // Predicated region
      $region9: #{tpu_custom_call.1} parent=5 // pred_check
        _
      $region10: #{tpu_custom_call.1} parent=5 // pred_check_branch
        %185 = sbr.rel (%p182) target = $region12
      $region11: #{tpu_custom_call.1} parent=5 // pred_region
        %s186 = ssub.s32 %s17, 1
        // Predicated region
        $region13: #{tpu_custom_call.1} parent=11 // pred_check
          %p187 = pneg %p102
        $region14: #{tpu_custom_call.1} parent=11 // pred_check_branch
          %189 = sbr.rel (%p187) target = $region16
        $region15: #{tpu_custom_call.1} parent=11 // pred_region
          _
        $region16: #{tpu_custom_call.1} parent=11 // pred_fallthru
          _
        // Predicated region
        $region17: #{tpu_custom_call.1} parent=11 // pred_check
          %p190 = pneg %p123
        $region18: #{tpu_custom_call.1} parent=11 // pred_check_branch
          %192 = sbr.rel (%p190) target = $region20
        $region19: #{tpu_custom_call.1} parent=11 // pred_region
          _
        $region20: #{tpu_custom_call.1} parent=11 // pred_fallthru
          _
        // Predicated region
        $region21: #{tpu_custom_call.1} parent=11 // pred_check
          %p193 = pneg %p144
        $region22: #{tpu_custom_call.1} parent=11 // pred_check_branch
          %195 = sbr.rel (%p193) target = $region24
        $region23: #{tpu_custom_call.1} parent=11 // pred_region
          _
        $region24: #{tpu_custom_call.1} parent=11 // pred_fallthru
          _
      $region12: #{tpu_custom_call.1} parent=5 // pred_fallthru
        _
      %p196 = scmp.lt.s32.totalorder %s17, 4
      // Predicated region
      $region25: #{tpu_custom_call.1} parent=5 // pred_check
        %p197 = pneg %p196
      $region26: #{tpu_custom_call.1} parent=5 // pred_check_branch
        %199 = sbr.rel (%p197) target = $region28
      $region27: #{tpu_custom_call.1} parent=5 // pred_region
        // Predicated region
        $region29: #{tpu_custom_call.1} parent=27 // pred_check
          %p200 = pneg %p49
        $region30: #{tpu_custom_call.1} parent=27 // pred_check_branch
          %202 = sbr.rel (%p200) target = $region32
        $region31: #{tpu_custom_call.1} parent=27 // pred_region
          %s203 = sand.u32 %s39, 1
          %s204 = scalar_lea.sflag [#allocation3], %s203
          %s205 = sand.u32 %s39, 1
          %s206 = smul.addr %s205, 32
          %s207 = scalar_lea.vmem [#allocation2], %s206
          %s209 = ssub.s32 512, 512
          %210 = vsyncadd %s204, %s209
          %s211 = smul.addr %s24, 8
          %s212 = smul.addr %s211, 64
          %s213 = scalar_lea.hbm %s0, %s212
          %s214 = sshll.u32 %s207, 4
          %s215 = int_to_ptr.vmem [resolvable:$true] %s214
          %220 = dma.hbm_to_vmem [thread:$0]  %s213, 512, %s215, %s204, 256, 256, 16
        $region32: #{tpu_custom_call.1} parent=27 // pred_fallthru
          _
        // Predicated region
        $region33: #{tpu_custom_call.1} parent=27 // pred_check
          %p221 = pneg %p75
        $region34: #{tpu_custom_call.1} parent=27 // pred_check_branch
          %223 = sbr.rel (%p221) target = $region36
        $region35: #{tpu_custom_call.1} parent=27 // pred_region
          %s224 = smul.u32 2, %s25
          %p225 = scmp.lt.s32.totalorder %s224, 3
          %s226 = scalar_select %p225, %s224, 3
          %s227 = smul.addr %s226, 4
          %s228 = scalar_lea.vmem %s1, %s227
          %s229 = smul.u32 2, %s25
        $region36: #{tpu_custom_call.1} parent=27 // pred_fallthru
          _
      $region28: #{tpu_custom_call.1} parent=5 // pred_fallthru
        _
      %p230 = scmp.le.s32.totalorder 1, %s17
      %p231 = scmp.lt.s32.totalorder %s17, 5
      %p232 = pnand %p230, %p231
      %p233 = pneg %p232
      // Predicated region
      $region37: #{tpu_custom_call.1} parent=5 // pred_check
        _
      $region38: #{tpu_custom_call.1} parent=5 // pred_check_branch
        %235 = sbr.rel (%p232) target = $region40
      $region39: #{tpu_custom_call.1} parent=5 // pred_region
        %s236 = ssub.s32 %s17, 1
        %s237 = sand.u32 %s42, 1
        %s238 = scalar_lea.sflag [#allocation3], %s237
        %s239 = sand.u32 %s42, 1
        %s240 = smul.addr %s239, 32
        %s241 = scalar_lea.vmem [#allocation2], %s240
        // Predicated region
        $region41: #{tpu_custom_call.1} parent=39 // pred_check
          %p242 = pneg %p55
        $region42: #{tpu_custom_call.1} parent=39 // pred_check_branch
          %244 = sbr.rel (%p242) target = $region44
        $region43: #{tpu_custom_call.1} parent=39 // pred_region
          %245 = dma.done %s238, 512
        $region44: #{tpu_custom_call.1} parent=39 // pred_fallthru
          _
        %s246 = sand.u32 %s42, 1
        %s247 = scalar_lea.sflag [#allocation3], %s246
        %s248 = sand.u32 %s42, 1
        %s249 = smul.addr %s248, 32
        %s250 = scalar_lea.vmem [#allocation2], %s249
        %p251 = pneg %p55
        %p252 = pneg %p52
        %s253 = smul.u32 2, %s27
        %p254 = scmp.lt.s32.totalorder %s253, 3
        %s255 = scalar_select %p254, %s253, 3
        %s256 = smul.addr %s255, 4
        %s257 = scalar_lea.vmem %s1, %s256
        %p258 = pneg %p81
        %p259 = pneg %p78
        %p260 = pneg %p102
        %p261 = pneg %p99
        %p262 = pneg %p123
        %p263 = pneg %p120
        %p264 = pneg %p144
        %p265 = pneg %p141
        %p266 = pneg %p172
        %p267 = pneg %p169
        %s268 = sand.u32 %s159, 1
        %s269 = scalar_lea.sflag [#allocation4], %s268
        %s270 = sand.u32 %s159, 1
        %s271 = smul.addr %s270, 512
        %s272 = scalar_lea.vmem [#allocation5], %s271
        %s273 = smul.u32 2, %s27
        %p274 = scmp.lt.s32.totalorder %s273, 3
        %s275 = scalar_select %p274, %s273, 3
        %s276 = smul.addr %s275, 4
        %s277 = scalar_lea.vmem %s1, %s276
        %s278 = smul.u32 2, %s27
        %s279 = smul.u32 64, %s27
        %v281 = vld [vmem:[%s241] sm:$0xff]
        %v282 = vld [vmem:[%s241 + $0x8] sm:$0xff]
        %v283 = vld [vmem:[%s241 + $0x10] sm:$0xff]
        %v284 = vld [vmem:[%s241 + $0x18] sm:$0xff]
        %v285 = vld [vmem:[%s277] sm:$0xf]
        %v286 = vld [vmem:[%s277 + $0x4] sm:$0xf]
        %v289 = vunpack.c.l.b16 %v285
        %v290 = vunpack.c.l.b16 %v286
        %v291 = vpack.c.b16 %v290, %v289
        %v296 = vunpack.c.l.b16 %v281
        %v297 = vunpack.c.h.b16 %v281
        %v298 = vunpack.c.l.b16 %v282
        %v299 = vunpack.c.h.b16 %v282
        %v300 = vunpack.c.l.b16 %v283
        %v301 = vunpack.c.h.b16 %v283
        %v302 = vunpack.c.l.b16 %v284
        %v303 = vunpack.c.h.b16 %v284
        %v304 = vpack.c.b16 %v300, %v296
        %v305 = vpack.c.b16 %v301, %v297
        %v306 = vpack.c.b16 %v302, %v298
        %v307 = vpack.c.b16 %v303, %v299
        %vm312 = vcmask 130048
        %v314 = vsel %vm312, %v291, 0
        %316 = vmatprep.subr.bf16.mxu0 %v305
        %317 = vmatpush1.bf16.msra.mxu0 %v304
        %318 = vmatprep.subr.bf16.mxu0 0
        %319 = vmatpush1.bf16.msra.mxu0 0
        %320 = vmatprep.subr.bf16.mxu0 0
        %321 = vmatpush1.bf16.msra.mxu0 0
        %322 = vmatprep.subr.bf16.mxu0 0
        %323 = vmatpush1.bf16.msra.mxu0 0
        %324 = vmatprep.subr.bf16.mxu0 0
        %325 = vmatpush1.bf16.msra.mxu0 0
        %326 = vmatprep.subr.bf16.mxu0 0
        %327 = vmatpush1.bf16.msra.mxu0 0
        %328 = vmatprep.subr.bf16.mxu0 0
        %329 = vmatpush1.bf16.msra.mxu0 0
        %330 = vmatprep.subr.bf16.mxu0 0
        %331 = vmatpush1.bf16.msra.mxu0 0
        %332 = vmatprep.subr.bf16.mxu0 0
        %333 = vmatpush1.bf16.msra.mxu0 0
        %334 = vmatprep.subr.bf16.mxu0 0
        %335 = vmatpush1.bf16.msra.mxu0 0
        %336 = vmatprep.subr.bf16.mxu0 0
        %337 = vmatpush1.bf16.msra.mxu0 0
        %338 = vmatprep.subr.bf16.mxu0 0
        %339 = vmatpush1.bf16.msra.mxu0 0
        %340 = vmatprep.subr.bf16.mxu0 0
        %341 = vmatpush1.bf16.msra.mxu0 0
        %342 = vmatprep.subr.bf16.mxu0 0
        %343 = vmatpush1.bf16.msra.mxu0 0
        %344 = vmatprep.subr.bf16.mxu0 0
        %345 = vmatpush1.bf16.msra.mxu0 0
        %346 = vmatprep.subr.bf16.mxu0 0
        %347 = vmatpush1.bf16.msra.mxu0 0
        %348 = vmatprep.mubr.bf16.mxu0 0
        %349 = vmatmul.mubr.bf16.gmra.mrb[0].mxu0 %v314
        %v350 = vpop.f32.mrb[0].mxu0
        %v351 = vadd.f32 0.0, %v350
        %v352 = vpop.f32.mrb[0].mxu0
        %v353 = vadd.f32 0.0, %v352
        %v354 = vpop.f32.mrb[0].mxu0
        %v355 = vadd.f32 0.0, %v354
        %v356 = vpop.f32.mrb[0].mxu0
        %v357 = vadd.f32 0.0, %v356
        %358 = vdwg.mxu0
        %359 = vmatprep.subr.bf16.mxu0 %v307
        %360 = vmatpush1.bf16.msra.mxu0 %v306
        %361 = vmatprep.subr.bf16.mxu0 0
        %362 = vmatpush1.bf16.msra.mxu0 0
        %363 = vmatprep.subr.bf16.mxu0 0
        %364 = vmatpush1.bf16.msra.mxu0 0
        %365 = vmatprep.subr.bf16.mxu0 0
        %366 = vmatpush1.bf16.msra.mxu0 0
        %367 = vmatprep.subr.bf16.mxu0 0
        %368 = vmatpush1.bf16.msra.mxu0 0
        %369 = vmatprep.subr.bf16.mxu0 0
        %370 = vmatpush1.bf16.msra.mxu0 0
        %371 = vmatprep.subr.bf16.mxu0 0
        %372 = vmatpush1.bf16.msra.mxu0 0
        %373 = vmatprep.subr.bf16.mxu0 0
        %374 = vmatpush1.bf16.msra.mxu0 0
        %375 = vmatprep.subr.bf16.mxu0 0
        %376 = vmatpush1.bf16.msra.mxu0 0
        %377 = vmatprep.subr.bf16.mxu0 0
        %378 = vmatpush1.bf16.msra.mxu0 0
        %379 = vmatprep.subr.bf16.mxu0 0
        %380 = vmatpush1.bf16.msra.mxu0 0
        %381 = vmatprep.subr.bf16.mxu0 0
        %382 = vmatpush1.bf16.msra.mxu0 0
        %383 = vmatprep.subr.bf16.mxu0 0
        %384 = vmatpush1.bf16.msra.mxu0 0
        %385 = vmatprep.subr.bf16.mxu0 0
        %386 = vmatpush1.bf16.msra.mxu0 0
        %387 = vmatprep.subr.bf16.mxu0 0
        %388 = vmatpush1.bf16.msra.mxu0 0
        %389 = vmatprep.subr.bf16.mxu0 0
        %390 = vmatpush1.bf16.msra.mxu0 0
        %391 = vmatprep.mubr.bf16.mxu0 0
        %392 = vmatmul.mubr.bf16.gmra.mrb[0].mxu0 %v314
        %v393 = vpop.f32.mrb[0].mxu0
        %v394 = vadd.f32 0.0, %v393
        %v395 = vpop.f32.mrb[0].mxu0
        %v396 = vadd.f32 0.0, %v395
        %v397 = vpop.f32.mrb[0].mxu0
        %v398 = vadd.f32 0.0, %v397
        %v399 = vpop.f32.mrb[0].mxu0
        %v400 = vadd.f32 0.0, %v399
        %401 = vdwg.mxu0
        %v402 = vpack.c.bf16 %v355, %v351
        %v403 = vpack.c.bf16 %v357, %v353
        %v404 = vpack.c.bf16 %v398, %v394
        %v405 = vpack.c.bf16 %v400, %v396
        %407 = vrot.lane.b32.xlu0 %v402, 96
        %v408 = vpop.permute.xlu0 %407
        %410 = vrot.lane.b32.xlu0 %v402, 64
        %v411 = vpop.permute.xlu0 %410
        %413 = vrot.lane.b32.xlu0 %v402, 32
        %v414 = vpop.permute.xlu0 %413
        %417 = vrot.lane.b32.xlu0 %v403, 96
        %v418 = vpop.permute.xlu0 %417
        %420 = vrot.lane.b32.xlu0 %v403, 64
        %v421 = vpop.permute.xlu0 %420
        %423 = vrot.lane.b32.xlu0 %v403, 32
        %v424 = vpop.permute.xlu0 %423
        %427 = vrot.lane.b32.xlu0 %v404, 96
        %v428 = vpop.permute.xlu0 %427
        %430 = vrot.lane.b32.xlu0 %v404, 64
        %v431 = vpop.permute.xlu0 %430
        %433 = vrot.lane.b32.xlu0 %v404, 32
        %v434 = vpop.permute.xlu0 %433
        %437 = vrot.lane.b32.xlu0 %v405, 96
        %v438 = vpop.permute.xlu0 %437
        %440 = vrot.lane.b32.xlu0 %v405, 64
        %v441 = vpop.permute.xlu0 %440
        %443 = vrot.lane.b32.xlu0 %v405, 32
        %v444 = vpop.permute.xlu0 %443
        %v446 = vcombine.low %v402, %v403
        %v447 = vcombine.high %v402, %v403
        %v449 = vunpack.c.l.s4 1983009808
        %v450 = vunpack.c.0.s8 %v449
        %v451 = vlaneseq
        %v452 = vshrl.u32 %v451, 7
        %v453 = vsub.s32 %v450, %v452
        %v454 = vrot.slane %v446, %v453
        %v456 = vunpack.c.l.s4 1983009808
        %v457 = vunpack.c.0.s8 %v456
        %v458 = vlaneseq
        %v459 = vshrl.u32 %v458, 7
        %v460 = vsub.s32 %v457, %v459
        %v461 = vrot.slane %v447, %v460
        %v462 = vcombine.low %v411, %v421
        %v463 = vcombine.high %v411, %v421
        %v465 = vunpack.c.l.s4 1983009808
        %v466 = vunpack.c.0.s8 %v465
        %v467 = vlaneseq
        %v468 = vshrl.u32 %v467, 7
        %v469 = vsub.s32 %v466, %v468
        %v470 = vrot.slane %v462, %v469
        %v472 = vunpack.c.l.s4 1983009808
        %v473 = vunpack.c.0.s8 %v472
        %v474 = vlaneseq
        %v475 = vshrl.u32 %v474, 7
        %v476 = vsub.s32 %v473, %v475
        %v477 = vrot.slane %v463, %v476
        %v478 = vcombine.low %v404, %v405
        %v479 = vcombine.high %v404, %v405
        %v481 = vunpack.c.l.s4 1983009808
        %v482 = vunpack.c.0.s8 %v481
        %v483 = vlaneseq
        %v484 = vshrl.u32 %v483, 7
        %v485 = vsub.s32 %v482, %v484
        %v486 = vrot.slane %v478, %v485
        %v488 = vunpack.c.l.s4 1983009808
        %v489 = vunpack.c.0.s8 %v488
        %v490 = vlaneseq
        %v491 = vshrl.u32 %v490, 7
        %v492 = vsub.s32 %v489, %v491
        %v493 = vrot.slane %v479, %v492
        %v494 = vcombine.low %v431, %v441
        %v495 = vcombine.high %v431, %v441
        %v497 = vunpack.c.l.s4 1983009808
        %v498 = vunpack.c.0.s8 %v497
        %v499 = vlaneseq
        %v500 = vshrl.u32 %v499, 7
        %v501 = vsub.s32 %v498, %v500
        %v502 = vrot.slane %v494, %v501
        %v504 = vunpack.c.l.s4 1983009808
        %v505 = vunpack.c.0.s8 %v504
        %v506 = vlaneseq
        %v507 = vshrl.u32 %v506, 7
        %v508 = vsub.s32 %v505, %v507
        %v509 = vrot.slane %v495, %v508
        %v510 = vcombine.low %v454, %v470
        %v511 = vcombine.high %v454, %v470
        %v513 = vunpack.c.l.s4 1934713408
        %v514 = vunpack.c.0.s8 %v513
        %v515 = vlaneseq
        %v516 = vshrl.u32 %v515, 7
        %v517 = vsub.s32 %v514, %v516
        %v518 = vrot.slane %v510, %v517
        %v520 = vunpack.c.l.s4 1934713408
        %v521 = vunpack.c.0.s8 %v520
        %v522 = vlaneseq
        %v523 = vshrl.u32 %v522, 7
        %v524 = vsub.s32 %v521, %v523
        %v525 = vrot.slane %v511, %v524
        %v526 = vcombine.low %v461, %v477
        %v527 = vcombine.high %v461, %v477
        %v529 = vunpack.c.l.s4 1934713408
        %v530 = vunpack.c.0.s8 %v529
        %v531 = vlaneseq
        %v532 = vshrl.u32 %v531, 7
        %v533 = vsub.s32 %v530, %v532
        %v534 = vrot.slane %v526, %v533
        %v536 = vunpack.c.l.s4 1934713408
        %v537 = vunpack.c.0.s8 %v536
        %v538 = vlaneseq
        %v539 = vshrl.u32 %v538, 7
        %v540 = vsub.s32 %v537, %v539
        %v541 = vrot.slane %v527, %v540
        %v542 = vcombine.low %v486, %v502
        %v543 = vcombine.high %v486, %v502
        %v545 = vunpack.c.l.s4 1934713408
        %v546 = vunpack.c.0.s8 %v545
        %v547 = vlaneseq
        %v548 = vshrl.u32 %v547, 7
        %v549 = vsub.s32 %v546, %v548
        %v550 = vrot.slane %v542, %v549
        %v552 = vunpack.c.l.s4 1934713408
        %v553 = vunpack.c.0.s8 %v552
        %v554 = vlaneseq
        %v555 = vshrl.u32 %v554, 7
        %v556 = vsub.s32 %v553, %v555
        %v557 = vrot.slane %v543, %v556
        %v558 = vcombine.low %v493, %v509
        %v559 = vcombine.high %v493, %v509
        %v561 = vunpack.c.l.s4 1934713408
        %v562 = vunpack.c.0.s8 %v561
        %v563 = vlaneseq
        %v564 = vshrl.u32 %v563, 7
        %v565 = vsub.s32 %v562, %v564
        %v566 = vrot.slane %v558, %v565
        %v568 = vunpack.c.l.s4 1934713408
        %v569 = vunpack.c.0.s8 %v568
        %v570 = vlaneseq
        %v571 = vshrl.u32 %v570, 7
        %v572 = vsub.s32 %v569, %v571
        %v573 = vrot.slane %v559, %v572
        %v574 = vcombine.low %v518, %v550
        %v575 = vcombine.high %v518, %v550
        %v576 = vcombine.low %v525, %v557
        %v577 = vcombine.high %v525, %v557
        %v578 = vcombine.low %v534, %v566
        %v579 = vcombine.high %v534, %v566
        %v580 = vcombine.low %v541, %v573
        %v581 = vcombine.high %v541, %v573
        %v582 = vcombine.low %v408, %v418
        %v583 = vcombine.high %v408, %v418
        %v585 = vunpack.c.l.s4 1983009808
        %v586 = vunpack.c.0.s8 %v585
        %v587 = vlaneseq
        %v588 = vshrl.u32 %v587, 7
        %v589 = vsub.s32 %v586, %v588
        %v590 = vrot.slane %v582, %v589
        %v592 = vunpack.c.l.s4 1983009808
        %v593 = vunpack.c.0.s8 %v592
        %v594 = vlaneseq
        %v595 = vshrl.u32 %v594, 7
        %v596 = vsub.s32 %v593, %v595
        %v597 = vrot.slane %v583, %v596
        %v598 = vcombine.low %v414, %v424
        %v599 = vcombine.high %v414, %v424
        %v601 = vunpack.c.l.s4 1983009808
        %v602 = vunpack.c.0.s8 %v601
        %v603 = vlaneseq
        %v604 = vshrl.u32 %v603, 7
        %v605 = vsub.s32 %v602, %v604
        %v606 = vrot.slane %v598, %v605
        %v608 = vunpack.c.l.s4 1983009808
        %v609 = vunpack.c.0.s8 %v608
        %v610 = vlaneseq
        %v611 = vshrl.u32 %v610, 7
        %v612 = vsub.s32 %v609, %v611
        %v613 = vrot.slane %v599, %v612
        %v614 = vcombine.low %v428, %v438
        %v615 = vcombine.high %v428, %v438
        %v617 = vunpack.c.l.s4 1983009808
        %v618 = vunpack.c.0.s8 %v617
        %v619 = vlaneseq
        %v620 = vshrl.u32 %v619, 7
        %v621 = vsub.s32 %v618, %v620
        %v622 = vrot.slane %v614, %v621
        %v624 = vunpack.c.l.s4 1983009808
        %v625 = vunpack.c.0.s8 %v624
        %v626 = vlaneseq
        %v627 = vshrl.u32 %v626, 7
        %v628 = vsub.s32 %v625, %v627
        %v629 = vrot.slane %v615, %v628
        %v630 = vcombine.low %v434, %v444
        %v631 = vcombine.high %v434, %v444
        %v633 = vunpack.c.l.s4 1983009808
        %v634 = vunpack.c.0.s8 %v633
        %v635 = vlaneseq
        %v636 = vshrl.u32 %v635, 7
        %v637 = vsub.s32 %v634, %v636
        %v638 = vrot.slane %v630, %v637
        %v640 = vunpack.c.l.s4 1983009808
        %v641 = vunpack.c.0.s8 %v640
        %v642 = vlaneseq
        %v643 = vshrl.u32 %v642, 7
        %v644 = vsub.s32 %v641, %v643
        %v645 = vrot.slane %v631, %v644
        %v646 = vcombine.low %v590, %v606
        %v647 = vcombine.high %v590, %v606
        %v649 = vunpack.c.l.s4 1934713408
        %v650 = vunpack.c.0.s8 %v649
        %v651 = vlaneseq
        %v652 = vshrl.u32 %v651, 7
        %v653 = vsub.s32 %v650, %v652
        %v654 = vrot.slane %v646, %v653
        %v656 = vunpack.c.l.s4 1934713408
        %v657 = vunpack.c.0.s8 %v656
        %v658 = vlaneseq
        %v659 = vshrl.u32 %v658, 7
        %v660 = vsub.s32 %v657, %v659
        %v661 = vrot.slane %v647, %v660
        %v662 = vcombine.low %v597, %v613
        %v663 = vcombine.high %v597, %v613
        %v665 = vunpack.c.l.s4 1934713408
        %v666 = vunpack.c.0.s8 %v665
        %v667 = vlaneseq
        %v668 = vshrl.u32 %v667, 7
        %v669 = vsub.s32 %v666, %v668
        %v670 = vrot.slane %v662, %v669
        %v672 = vunpack.c.l.s4 1934713408
        %v673 = vunpack.c.0.s8 %v672
        %v674 = vlaneseq
        %v675 = vshrl.u32 %v674, 7
        %v676 = vsub.s32 %v673, %v675
        %v677 = vrot.slane %v663, %v676
        %v678 = vcombine.low %v622, %v638
        %v679 = vcombine.high %v622, %v638
        %v681 = vunpack.c.l.s4 1934713408
        %v682 = vunpack.c.0.s8 %v681
        %v683 = vlaneseq
        %v684 = vshrl.u32 %v683, 7
        %v685 = vsub.s32 %v682, %v684
        %v686 = vrot.slane %v678, %v685
        %v688 = vunpack.c.l.s4 1934713408
        %v689 = vunpack.c.0.s8 %v688
        %v690 = vlaneseq
        %v691 = vshrl.u32 %v690, 7
        %v692 = vsub.s32 %v689, %v691
        %v693 = vrot.slane %v679, %v692
        %v694 = vcombine.low %v629, %v645
        %v695 = vcombine.high %v629, %v645
        %v697 = vunpack.c.l.s4 1934713408
        %v698 = vunpack.c.0.s8 %v697
        %v699 = vlaneseq
        %v700 = vshrl.u32 %v699, 7
        %v701 = vsub.s32 %v698, %v700
        %v702 = vrot.slane %v694, %v701
        %v704 = vunpack.c.l.s4 1934713408
        %v705 = vunpack.c.0.s8 %v704
        %v706 = vlaneseq
        %v707 = vshrl.u32 %v706, 7
        %v708 = vsub.s32 %v705, %v707
        %v709 = vrot.slane %v695, %v708
        %v710 = vcombine.low %v654, %v686
        %v711 = vcombine.high %v654, %v686
        %v712 = vcombine.low %v661, %v693
        %v713 = vcombine.high %v661, %v693
        %v714 = vcombine.low %v670, %v702
        %v715 = vcombine.high %v670, %v702
        %v716 = vcombine.low %v677, %v709
        %v717 = vcombine.high %v677, %v709
        %v720 = vpack.i.b16 %v710, %v574
        %v722 = vshrl.u32 %v574, 16
        %v723 = vshrl.u32 %v710, 16
        %v724 = vpack.i.b16 %v723, %v722
        %v728 = vpack.i.b16 %v711, %v575
        %v730 = vshrl.u32 %v575, 16
        %v731 = vshrl.u32 %v711, 16
        %v732 = vpack.i.b16 %v731, %v730
        %v736 = vpack.i.b16 %v712, %v576
        %v738 = vshrl.u32 %v576, 16
        %v739 = vshrl.u32 %v712, 16
        %v740 = vpack.i.b16 %v739, %v738
        %v744 = vpack.i.b16 %v713, %v577
        %v746 = vshrl.u32 %v577, 16
        %v747 = vshrl.u32 %v713, 16
        %v748 = vpack.i.b16 %v747, %v746
        %v752 = vpack.i.b16 %v714, %v578
        %v754 = vshrl.u32 %v578, 16
        %v755 = vshrl.u32 %v714, 16
        %v756 = vpack.i.b16 %v755, %v754
        %v760 = vpack.i.b16 %v715, %v579
        %v762 = vshrl.u32 %v579, 16
        %v763 = vshrl.u32 %v715, 16
        %v764 = vpack.i.b16 %v763, %v762
        %v768 = vpack.i.b16 %v716, %v580
        %v770 = vshrl.u32 %v580, 16
        %v771 = vshrl.u32 %v716, 16
        %v772 = vpack.i.b16 %v771, %v770
        %v776 = vpack.i.b16 %v717, %v581
        %v778 = vshrl.u32 %v581, 16
        %v779 = vshrl.u32 %v717, 16
        %v780 = vpack.i.b16 %v779, %v778
        %v782 = vld [vmem:[%s2] sm:$0xf]
        %v783 = vld [vmem:[%s2 + $0x4] sm:$0xf]
        %v784 = vld [vmem:[%s2 + $0x8] sm:$0xf]
        %v785 = vld [vmem:[%s2 + $0xc] sm:$0xf]
        %v790 = vunpack.c.l.b16 %v782
        %v791 = vunpack.c.l.b16 %v783
        %v792 = vunpack.c.l.b16 %v784
        %v793 = vunpack.c.l.b16 %v785
        %v794 = vpack.c.b16 %v791, %v790
        %v795 = vpack.c.b16 %v793, %v792
        %v797 = vsel %vm312, %v794, 0
        %v800 = vsel %vm312, %v795, 0
        %802 = vmatprep.subr.bf16.mxu0 0
        %803 = vmatpush1.bf16.msra.mxu0 %v720
        %804 = vmatprep.subr.bf16.mxu0 0
        %805 = vmatpush1.bf16.msra.mxu0 0
        %806 = vmatprep.subr.bf16.mxu0 0
        %807 = vmatpush1.bf16.msra.mxu0 0
        %808 = vmatprep.subr.bf16.mxu0 0
        %809 = vmatpush1.bf16.msra.mxu0 0
        %810 = vmatprep.subr.bf16.mxu0 0
        %811 = vmatpush1.bf16.msra.mxu0 0
        %812 = vmatprep.subr.bf16.mxu0 0
        %813 = vmatpush1.bf16.msra.mxu0 0
        %814 = vmatprep.subr.bf16.mxu0 0
        %815 = vmatpush1.bf16.msra.mxu0 0
        %816 = vmatprep.subr.bf16.mxu0 0
        %817 = vmatpush1.bf16.msra.mxu0 0
        %818 = vmatprep.subr.bf16.mxu0 0
        %819 = vmatpush1.bf16.msra.mxu0 0
        %820 = vmatprep.subr.bf16.mxu0 0
        %821 = vmatpush1.bf16.msra.mxu0 0
        %822 = vmatprep.subr.bf16.mxu0 0
        %823 = vmatpush1.bf16.msra.mxu0 0
        %824 = vmatprep.subr.bf16.mxu0 0
        %825 = vmatpush1.bf16.msra.mxu0 0
        %826 = vmatprep.subr.bf16.mxu0 0
        %827 = vmatpush1.bf16.msra.mxu0 0
        %828 = vmatprep.subr.bf16.mxu0 0
        %829 = vmatpush1.bf16.msra.mxu0 0
        %830 = vmatprep.subr.bf16.mxu0 0
        %831 = vmatpush1.bf16.msra.mxu0 0
        %832 = vmatprep.subr.bf16.mxu0 0
        %833 = vmatpush1.bf16.msra.mxu0 0
        %834 = vmatprep.mubr.bf16.mxu0 0
        %835 = vmatmul.mubr.bf16.gmra.mrb[0].mxu0 %v797
        %v836 = vpop.f32.mrb[0].mxu0
        %v837 = vadd.f32 0.0, %v836
        %v838 = vpop.f32.mrb[0].mxu0
        %v839 = vpop.f32.mrb[0].mxu0
        %v840 = vadd.f32 0.0, %v839
        %v841 = vpop.f32.mrb[0].mxu0
        %842 = vmatprep.mubr.bf16.mxu0 0
        %843 = vmatmul.mubr.bf16.gmra.mrb[0].mxu0 %v800
        %v844 = vpop.f32.mrb[0].mxu0
        %v845 = vadd.f32 0.0, %v844
        %v846 = vpop.f32.mrb[0].mxu0
        %v847 = vpop.f32.mrb[0].mxu0
        %v848 = vadd.f32 0.0, %v847
        %v849 = vpop.f32.mrb[0].mxu0
        %850 = vdwg.mxu0
        %851 = vmatprep.subr.bf16.mxu0 0
        %852 = vmatpush1.bf16.msra.mxu0 %v724
        %853 = vmatprep.subr.bf16.mxu0 0
        %854 = vmatpush1.bf16.msra.mxu0 0
        %855 = vmatprep.subr.bf16.mxu0 0
        %856 = vmatpush1.bf16.msra.mxu0 0
        %857 = vmatprep.subr.bf16.mxu0 0
        %858 = vmatpush1.bf16.msra.mxu0 0
        %859 = vmatprep.subr.bf16.mxu0 0
        %860 = vmatpush1.bf16.msra.mxu0 0
        %861 = vmatprep.subr.bf16.mxu0 0
        %862 = vmatpush1.bf16.msra.mxu0 0
        %863 = vmatprep.subr.bf16.mxu0 0
        %864 = vmatpush1.bf16.msra.mxu0 0
        %865 = vmatprep.subr.bf16.mxu0 0
        %866 = vmatpush1.bf16.msra.mxu0 0
        %867 = vmatprep.subr.bf16.mxu0 0
        %868 = vmatpush1.bf16.msra.mxu0 0
        %869 = vmatprep.subr.bf16.mxu0 0
        %870 = vmatpush1.bf16.msra.mxu0 0
        %871 = vmatprep.subr.bf16.mxu0 0
        %872 = vmatpush1.bf16.msra.mxu0 0
        %873 = vmatprep.subr.bf16.mxu0 0
        %874 = vmatpush1.bf16.msra.mxu0 0
        %875 = vmatprep.subr.bf16.mxu0 0
        %876 = vmatpush1.bf16.msra.mxu0 0
        %877 = vmatprep.subr.bf16.mxu0 0
        %878 = vmatpush1.bf16.msra.mxu0 0
        %879 = vmatprep.subr.bf16.mxu0 0
        %880 = vmatpush1.bf16.msra.mxu0 0
        %881 = vmatprep.subr.bf16.mxu0 0
        %882 = vmatpush1.bf16.msra.mxu0 0
        %883 = vmatprep.mubr.bf16.mxu0 0
        %884 = vmatmul.mubr.bf16.gmra.mrb[0].mxu0 %v797
        %v885 = vpop.f32.mrb[0].mxu0
        %v886 = vadd.f32 0.0, %v885
        %v887 = vpop.f32.mrb[0].mxu0
        %v888 = vpop.f32.mrb[0].mxu0
        %v889 = vadd.f32 0.0, %v888
        %v890 = vpop.f32.mrb[0].mxu0
        %891 = vmatprep.mubr.bf16.mxu0 0
        %892 = vmatmul.mubr.bf16.gmra.mrb[0].mxu0 %v800
        %v893 = vpop.f32.mrb[0].mxu0
        %v894 = vadd.f32 0.0, %v893
        %v895 = vpop.f32.mrb[0].mxu0
        %v896 = vpop.f32.mrb[0].mxu0
        %v897 = vadd.f32 0.0, %v896
        %v898 = vpop.f32.mrb[0].mxu0
        %899 = vdwg.mxu0
        %900 = vmatprep.subr.bf16.mxu0 0
        %901 = vmatpush1.bf16.msra.mxu0 %v728
        %902 = vmatprep.subr.bf16.mxu0 0
        %903 = vmatpush1.bf16.msra.mxu0 0
        %904 = vmatprep.subr.bf16.mxu0 0
        %905 = vmatpush1.bf16.msra.mxu0 0
        %906 = vmatprep.subr.bf16.mxu0 0
        %907 = vmatpush1.bf16.msra.mxu0 0
        %908 = vmatprep.subr.bf16.mxu0 0
        %909 = vmatpush1.bf16.msra.mxu0 0
        %910 = vmatprep.subr.bf16.mxu0 0
        %911 = vmatpush1.bf16.msra.mxu0 0
        %912 = vmatprep.subr.bf16.mxu0 0
        %913 = vmatpush1.bf16.msra.mxu0 0
        %914 = vmatprep.subr.bf16.mxu0 0
        %915 = vmatpush1.bf16.msra.mxu0 0
        %916 = vmatprep.subr.bf16.mxu0 0
        %917 = vmatpush1.bf16.msra.mxu0 0
        %918 = vmatprep.subr.bf16.mxu0 0
        %919 = vmatpush1.bf16.msra.mxu0 0
        %920 = vmatprep.subr.bf16.mxu0 0
        %921 = vmatpush1.bf16.msra.mxu0 0
        %922 = vmatprep.subr.bf16.mxu0 0
        %923 = vmatpush1.bf16.msra.mxu0 0
        %924 = vmatprep.subr.bf16.mxu0 0
        %925 = vmatpush1.bf16.msra.mxu0 0
        %926 = vmatprep.subr.bf16.mxu0 0
        %927 = vmatpush1.bf16.msra.mxu0 0
        %928 = vmatprep.subr.bf16.mxu0 0
        %929 = vmatpush1.bf16.msra.mxu0 0
        %930 = vmatprep.subr.bf16.mxu0 0
        %931 = vmatpush1.bf16.msra.mxu0 0
        %932 = vmatprep.mubr.bf16.mxu0 0
        %933 = vmatmul.mubr.bf16.gmra.mrb[0].mxu0 %v797
        %v934 = vpop.f32.mrb[0].mxu0
        %v935 = vadd.f32 0.0, %v934
        %v936 = vpop.f32.mrb[0].mxu0
        %v937 = vpop.f32.mrb[0].mxu0
        %v938 = vadd.f32 0.0, %v937
        %v939 = vpop.f32.mrb[0].mxu0
        %940 = vmatprep.mubr.bf16.mxu0 0
        %941 = vmatmul.mubr.bf16.gmra.mrb[0].mxu0 %v800
        %v942 = vpop.f32.mrb[0].mxu0
        %v943 = vadd.f32 0.0, %v942
        %v944 = vpop.f32.mrb[0].mxu0
        %v945 = vpop.f32.mrb[0].mxu0
        %v946 = vadd.f32 0.0, %v945
        %v947 = vpop.f32.mrb[0].mxu0
        %948 = vdwg.mxu0
        %949 = vmatprep.subr.bf16.mxu0 0
        %950 = vmatpush1.bf16.msra.mxu0 %v732
        %951 = vmatprep.subr.bf16.mxu0 0
        %952 = vmatpush1.bf16.msra.mxu0 0
        %953 = vmatprep.subr.bf16.mxu0 0
        %954 = vmatpush1.bf16.msra.mxu0 0
        %955 = vmatprep.subr.bf16.mxu0 0
        %956 = vmatpush1.bf16.msra.mxu0 0
        %957 = vmatprep.subr.bf16.mxu0 0
        %958 = vmatpush1.bf16.msra.mxu0 0
        %959 = vmatprep.subr.bf16.mxu0 0
        %960 = vmatpush1.bf16.msra.mxu0 0
        %961 = vmatprep.subr.bf16.mxu0 0
        %962 = vmatpush1.bf16.msra.mxu0 0
        %963 = vmatprep.subr.bf16.mxu0 0
        %964 = vmatpush1.bf16.msra.mxu0 0
        %965 = vmatprep.subr.bf16.mxu0 0
        %966 = vmatpush1.bf16.msra.mxu0 0
        %967 = vmatprep.subr.bf16.mxu0 0
        %968 = vmatpush1.bf16.msra.mxu0 0
        %969 = vmatprep.subr.bf16.mxu0 0
        %970 = vmatpush1.bf16.msra.mxu0 0
        %971 = vmatprep.subr.bf16.mxu0 0
        %972 = vmatpush1.bf16.msra.mxu0 0
        %973 = vmatprep.subr.bf16.mxu0 0
        %974 = vmatpush1.bf16.msra.mxu0 0
        %975 = vmatprep.subr.bf16.mxu0 0
        %976 = vmatpush1.bf16.msra.mxu0 0
        %977 = vmatprep.subr.bf16.mxu0 0
        %978 = vmatpush1.bf16.msra.mxu0 0
        %979 = vmatprep.subr.bf16.mxu0 0
        %980 = vmatpush1.bf16.msra.mxu0 0
        %981 = vmatprep.mubr.bf16.mxu0 0
        %982 = vmatmul.mubr.bf16.gmra.mrb[0].mxu0 %v797
        %v983 = vpop.f32.mrb[0].mxu0
        %v984 = vadd.f32 0.0, %v983
        %v985 = vpop.f32.mrb[0].mxu0
        %v986 = vpop.f32.mrb[0].mxu0
        %v987 = vadd.f32 0.0, %v986
        %v988 = vpop.f32.mrb[0].mxu0
        %989 = vmatprep.mubr.bf16.mxu0 0
        %990 = vmatmul.mubr.bf16.gmra.mrb[0].mxu0 %v800
        %v991 = vpop.f32.mrb[0].mxu0
        %v992 = vadd.f32 0.0, %v991
        %v993 = vpop.f32.mrb[0].mxu0
        %v994 = vpop.f32.mrb[0].mxu0
        %v995 = vadd.f32 0.0, %v994
        %v996 = vpop.f32.mrb[0].mxu0
        %997 = vdwg.mxu0
        %998 = vmatprep.subr.bf16.mxu0 0
        %999 = vmatpush1.bf16.msra.mxu0 %v736
        %1000 = vmatprep.subr.bf16.mxu0 0
        %1001 = vmatpush1.bf16.msra.mxu0 0
        %1002 = vmatprep.subr.bf16.mxu0 0
        %1003 = vmatpush1.bf16.msra.mxu0 0
        %1004 = vmatprep.subr.bf16.mxu0 0
        %1005 = vmatpush1.bf16.msra.mxu0 0
        %1006 = vmatprep.subr.bf16.mxu0 0
        %1007 = vmatpush1.bf16.msra.mxu0 0
        %1008 = vmatprep.subr.bf16.mxu0 0
        %1009 = vmatpush1.bf16.msra.mxu0 0
        %1010 = vmatprep.subr.bf16.mxu0 0
        %1011 = vmatpush1.bf16.msra.mxu0 0
        %1012 = vmatprep.subr.bf16.mxu0 0
        %1013 = vmatpush1.bf16.msra.mxu0 0
        %1014 = vmatprep.subr.bf16.mxu0 0
        %1015 = vmatpush1.bf16.msra.mxu0 0
        %1016 = vmatprep.subr.bf16.mxu0 0
        %1017 = vmatpush1.bf16.msra.mxu0 0
        %1018 = vmatprep.subr.bf16.mxu0 0
        %1019 = vmatpush1.bf16.msra.mxu0 0
        %1020 = vmatprep.subr.bf16.mxu0 0
        %1021 = vmatpush1.bf16.msra.mxu0 0
        %1022 = vmatprep.subr.bf16.mxu0 0
        %1023 = vmatpush1.bf16.msra.mxu0 0
        %1024 = vmatprep.subr.bf16.mxu0 0
        %1025 = vmatpush1.bf16.msra.mxu0 0
        %1026 = vmatprep.subr.bf16.mxu0 0
        %1027 = vmatpush1.bf16.msra.mxu0 0
        %1028 = vmatprep.subr.bf16.mxu0 0
        %1029 = vmatpush1.bf16.msra.mxu0 0
        %1030 = vmatprep.mubr.bf16.mxu0 0
        %1031 = vmatmul.mubr.bf16.gmra.mrb[0].mxu0 %v797
        %v1032 = vpop.f32.mrb[0].mxu0
        %v1033 = vadd.f32 0.0, %v1032
        %v1034 = vpop.f32.mrb[0].mxu0
        %v1035 = vpop.f32.mrb[0].mxu0
        %v1036 = vadd.f32 0.0, %v1035
        %v1037 = vpop.f32.mrb[0].mxu0
        %1038 = vmatprep.mubr.bf16.mxu0 0
        %1039 = vmatmul.mubr.bf16.gmra.mrb[0].mxu0 %v800
        %v1040 = vpop.f32.mrb[0].mxu0
        %v1041 = vadd.f32 0.0, %v1040
        %v1042 = vpop.f32.mrb[0].mxu0
        %v1043 = vpop.f32.mrb[0].mxu0
        %v1044 = vadd.f32 0.0, %v1043
        %v1045 = vpop.f32.mrb[0].mxu0
        %1046 = vdwg.mxu0
        %1047 = vmatprep.subr.bf16.mxu0 0
        %1048 = vmatpush1.bf16.msra.mxu0 %v740
        %1049 = vmatprep.subr.bf16.mxu0 0
        %1050 = vmatpush1.bf16.msra.mxu0 0
        %1051 = vmatprep.subr.bf16.mxu0 0
        %1052 = vmatpush1.bf16.msra.mxu0 0
        %1053 = vmatprep.subr.bf16.mxu0 0
        %1054 = vmatpush1.bf16.msra.mxu0 0
        %1055 = vmatprep.subr.bf16.mxu0 0
        %1056 = vmatpush1.bf16.msra.mxu0 0
        %1057 = vmatprep.subr.bf16.mxu0 0
        %1058 = vmatpush1.bf16.msra.mxu0 0
        %1059 = vmatprep.subr.bf16.mxu0 0
        %1060 = vmatpush1.bf16.msra.mxu0 0
        %1061 = vmatprep.subr.bf16.mxu0 0
        %1062 = vmatpush1.bf16.msra.mxu0 0
        %1063 = vmatprep.subr.bf16.mxu0 0
        %1064 = vmatpush1.bf16.msra.mxu0 0
        %1065 = vmatprep.subr.bf16.mxu0 0
        %1066 = vmatpush1.bf16.msra.mxu0 0
        %1067 = vmatprep.subr.bf16.mxu0 0
        %1068 = vmatpush1.bf16.msra.mxu0 0
        %1069 = vmatprep.subr.bf16.mxu0 0
        %1070 = vmatpush1.bf16.msra.mxu0 0
        %1071 = vmatprep.subr.bf16.mxu0 0
        %1072 = vmatpush1.bf16.msra.mxu0 0
        %1073 = vmatprep.subr.bf16.mxu0 0
        %1074 = vmatpush1.bf16.msra.mxu0 0
        %1075 = vmatprep.subr.bf16.mxu0 0
        %1076 = vmatpush1.bf16.msra.mxu0 0
        %1077 = vmatprep.subr.bf16.mxu0 0
        %1078 = vmatpush1.bf16.msra.mxu0 0
        %1079 = vmatprep.mubr.bf16.mxu0 0
        %1080 = vmatmul.mubr.bf16.gmra.mrb[0].mxu0 %v797
        %v1081 = vpop.f32.mrb[0].mxu0
        %v1082 = vadd.f32 0.0, %v1081
        %v1083 = vpop.f32.mrb[0].mxu0
        %v1084 = vpop.f32.mrb[0].mxu0
        %v1085 = vadd.f32 0.0, %v1084
        %v1086 = vpop.f32.mrb[0].mxu0
        %1087 = vmatprep.mubr.bf16.mxu0 0
        %1088 = vmatmul.mubr.bf16.gmra.mrb[0].mxu0 %v800
        %v1089 = vpop.f32.mrb[0].mxu0
        %v1090 = vadd.f32 0.0, %v1089
        %v1091 = vpop.f32.mrb[0].mxu0
        %v1092 = vpop.f32.mrb[0].mxu0
        %v1093 = vadd.f32 0.0, %v1092
        %v1094 = vpop.f32.mrb[0].mxu0
        %1095 = vdwg.mxu0
        %1096 = vmatprep.subr.bf16.mxu0 0
        %1097 = vmatpush1.bf16.msra.mxu0 %v744
        %1098 = vmatprep.subr.bf16.mxu0 0
        %1099 = vmatpush1.bf16.msra.mxu0 0
        %1100 = vmatprep.subr.bf16.mxu0 0
        %1101 = vmatpush1.bf16.msra.mxu0 0
        %1102 = vmatprep.subr.bf16.mxu0 0
        %1103 = vmatpush1.bf16.msra.mxu0 0
        %1104 = vmatprep.subr.bf16.mxu0 0
        %1105 = vmatpush1.bf16.msra.mxu0 0
        %1106 = vmatprep.subr.bf16.mxu0 0
        %1107 = vmatpush1.bf16.msra.mxu0 0
        %1108 = vmatprep.subr.bf16.mxu0 0
        %1109 = vmatpush1.bf16.msra.mxu0 0
        %1110 = vmatprep.subr.bf16.mxu0 0
        %1111 = vmatpush1.bf16.msra.mxu0 0
        %1112 = vmatprep.subr.bf16.mxu0 0
        %1113 = vmatpush1.bf16.msra.mxu0 0
        %1114 = vmatprep.subr.bf16.mxu0 0
        %1115 = vmatpush1.bf16.msra.mxu0 0
        %1116 = vmatprep.subr.bf16.mxu0 0
        %1117 = vmatpush1.bf16.msra.mxu0 0
        %1118 = vmatprep.subr.bf16.mxu0 0
        %1119 = vmatpush1.bf16.msra.mxu0 0
        %1120 = vmatprep.subr.bf16.mxu0 0
        %1121 = vmatpush1.bf16.msra.mxu0 0
        %1122 = vmatprep.subr.bf16.mxu0 0
        %1123 = vmatpush1.bf16.msra.mxu0 0
        %1124 = vmatprep.subr.bf16.mxu0 0
        %1125 = vmatpush1.bf16.msra.mxu0 0
        %1126 = vmatprep.subr.bf16.mxu0 0
        %1127 = vmatpush1.bf16.msra.mxu0 0
        %1128 = vmatprep.mubr.bf16.mxu0 0
        %1129 = vmatmul.mubr.bf16.gmra.mrb[0].mxu0 %v797
        %v1130 = vpop.f32.mrb[0].mxu0
        %v1131 = vadd.f32 0.0, %v1130
        %v1132 = vpop.f32.mrb[0].mxu0
        %v1133 = vpop.f32.mrb[0].mxu0
        %v1134 = vadd.f32 0.0, %v1133
        %v1135 = vpop.f32.mrb[0].mxu0
        %1136 = vmatprep.mubr.bf16.mxu0 0
        %1137 = vmatmul.mubr.bf16.gmra.mrb[0].mxu0 %v800
        %v1138 = vpop.f32.mrb[0].mxu0
        %v1139 = vadd.f32 0.0, %v1138
        %v1140 = vpop.f32.mrb[0].mxu0
        %v1141 = vpop.f32.mrb[0].mxu0
        %v1142 = vadd.f32 0.0, %v1141
        %v1143 = vpop.f32.mrb[0].mxu0
        %1144 = vdwg.mxu0
        %1145 = vmatprep.subr.bf16.mxu0 0
        %1146 = vmatpush1.bf16.msra.mxu0 %v748
        %1147 = vmatprep.subr.bf16.mxu0 0
        %1148 = vmatpush1.bf16.msra.mxu0 0
        %1149 = vmatprep.subr.bf16.mxu0 0
        %1150 = vmatpush1.bf16.msra.mxu0 0
        %1151 = vmatprep.subr.bf16.mxu0 0
        %1152 = vmatpush1.bf16.msra.mxu0 0
        %1153 = vmatprep.subr.bf16.mxu0 0
        %1154 = vmatpush1.bf16.msra.mxu0 0
        %1155 = vmatprep.subr.bf16.mxu0 0
        %1156 = vmatpush1.bf16.msra.mxu0 0
        %1157 = vmatprep.subr.bf16.mxu0 0
        %1158 = vmatpush1.bf16.msra.mxu0 0
        %1159 = vmatprep.subr.bf16.mxu0 0
        %1160 = vmatpush1.bf16.msra.mxu0 0
        %1161 = vmatprep.subr.bf16.mxu0 0
        %1162 = vmatpush1.bf16.msra.mxu0 0
        %1163 = vmatprep.subr.bf16.mxu0 0
        %1164 = vmatpush1.bf16.msra.mxu0 0
        %1165 = vmatprep.subr.bf16.mxu0 0
        %1166 = vmatpush1.bf16.msra.mxu0 0
        %1167 = vmatprep.subr.bf16.mxu0 0
        %1168 = vmatpush1.bf16.msra.mxu0 0
        %1169 = vmatprep.subr.bf16.mxu0 0
        %1170 = vmatpush1.bf16.msra.mxu0 0
        %1171 = vmatprep.subr.bf16.mxu0 0
        %1172 = vmatpush1.bf16.msra.mxu0 0
        %1173 = vmatprep.subr.bf16.mxu0 0
        %1174 = vmatpush1.bf16.msra.mxu0 0
        %1175 = vmatprep.subr.bf16.mxu0 0
        %1176 = vmatpush1.bf16.msra.mxu0 0
        %1177 = vmatprep.mubr.bf16.mxu0 0
        %1178 = vmatmul.mubr.bf16.gmra.mrb[0].mxu0 %v797
        %v1179 = vpop.f32.mrb[0].mxu0
        %v1180 = vadd.f32 0.0, %v1179
        %v1181 = vpop.f32.mrb[0].mxu0
        %v1182 = vpop.f32.mrb[0].mxu0
        %v1183 = vadd.f32 0.0, %v1182
        %v1184 = vpop.f32.mrb[0].mxu0
        %1185 = vmatprep.mubr.bf16.mxu0 0
        %1186 = vmatmul.mubr.bf16.gmra.mrb[0].mxu0 %v800
        %v1187 = vpop.f32.mrb[0].mxu0
        %v1188 = vadd.f32 0.0, %v1187
        %v1189 = vpop.f32.mrb[0].mxu0
        %v1190 = vpop.f32.mrb[0].mxu0
        %v1191 = vadd.f32 0.0, %v1190
        %v1192 = vpop.f32.mrb[0].mxu0
        %1193 = vdwg.mxu0
        %1194 = vmatprep.subr.bf16.mxu0 0
        %1195 = vmatpush1.bf16.msra.mxu0 %v752
        %1196 = vmatprep.subr.bf16.mxu0 0
        %1197 = vmatpush1.bf16.msra.mxu0 0
        %1198 = vmatprep.subr.bf16.mxu0 0
        %1199 = vmatpush1.bf16.msra.mxu0 0
        %1200 = vmatprep.subr.bf16.mxu0 0
        %1201 = vmatpush1.bf16.msra.mxu0 0
        %1202 = vmatprep.subr.bf16.mxu0 0
        %1203 = vmatpush1.bf16.msra.mxu0 0
        %1204 = vmatprep.subr.bf16.mxu0 0
        %1205 = vmatpush1.bf16.msra.mxu0 0
        %1206 = vmatprep.subr.bf16.mxu0 0
        %1207 = vmatpush1.bf16.msra.mxu0 0
        %1208 = vmatprep.subr.bf16.mxu0 0
        %1209 = vmatpush1.bf16.msra.mxu0 0
        %1210 = vmatprep.subr.bf16.mxu0 0
        %1211 = vmatpush1.bf16.msra.mxu0 0
        %1212 = vmatprep.subr.bf16.mxu0 0
        %1213 = vmatpush1.bf16.msra.mxu0 0
        %1214 = vmatprep.subr.bf16.mxu0 0
        %1215 = vmatpush1.bf16.msra.mxu0 0
        %1216 = vmatprep.subr.bf16.mxu0 0
        %1217 = vmatpush1.bf16.msra.mxu0 0
        %1218 = vmatprep.subr.bf16.mxu0 0
        %1219 = vmatpush1.bf16.msra.mxu0 0
        %1220 = vmatprep.subr.bf16.mxu0 0
        %1221 = vmatpush1.bf16.msra.mxu0 0
        %1222 = vmatprep.subr.bf16.mxu0 0
        %1223 = vmatpush1.bf16.msra.mxu0 0
        %1224 = vmatprep.subr.bf16.mxu0 0
        %1225 = vmatpush1.bf16.msra.mxu0 0
        %1226 = vmatprep.mubr.bf16.mxu0 0
        %1227 = vmatmul.mubr.bf16.gmra.mrb[0].mxu0 %v797
        %v1228 = vpop.f32.mrb[0].mxu0
        %v1229 = vadd.f32 0.0, %v1228
        %v1230 = vpop.f32.mrb[0].mxu0
        %v1231 = vpop.f32.mrb[0].mxu0
        %v1232 = vadd.f32 0.0, %v1231
        %v1233 = vpop.f32.mrb[0].mxu0
        %1234 = vmatprep.mubr.bf16.mxu0 0
        %1235 = vmatmul.mubr.bf16.gmra.mrb[0].mxu0 %v800
        %v1236 = vpop.f32.mrb[0].mxu0
        %v1237 = vadd.f32 0.0, %v1236
        %v1238 = vpop.f32.mrb[0].mxu0
        %v1239 = vpop.f32.mrb[0].mxu0
        %v1240 = vadd.f32 0.0, %v1239
        %v1241 = vpop.f32.mrb[0].mxu0
        %1242 = vdwg.mxu0
        %1243 = vmatprep.subr.bf16.mxu0 0
        %1244 = vmatpush1.bf16.msra.mxu0 %v756
        %1245 = vmatprep.subr.bf16.mxu0 0
        %1246 = vmatpush1.bf16.msra.mxu0 0
        %1247 = vmatprep.subr.bf16.mxu0 0
        %1248 = vmatpush1.bf16.msra.mxu0 0
        %1249 = vmatprep.subr.bf16.mxu0 0
        %1250 = vmatpush1.bf16.msra.mxu0 0
        %1251 = vmatprep.subr.bf16.mxu0 0
        %1252 = vmatpush1.bf16.msra.mxu0 0
        %1253 = vmatprep.subr.bf16.mxu0 0
        %1254 = vmatpush1.bf16.msra.mxu0 0
        %1255 = vmatprep.subr.bf16.mxu0 0
        %1256 = vmatpush1.bf16.msra.mxu0 0
        %1257 = vmatprep.subr.bf16.mxu0 0
        %1258 = vmatpush1.bf16.msra.mxu0 0
        %1259 = vmatprep.subr.bf16.mxu0 0
        %1260 = vmatpush1.bf16.msra.mxu0 0
        %1261 = vmatprep.subr.bf16.mxu0 0
        %1262 = vmatpush1.bf16.msra.mxu0 0
        %1263 = vmatprep.subr.bf16.mxu0 0
        %1264 = vmatpush1.bf16.msra.mxu0 0
        %1265 = vmatprep.subr.bf16.mxu0 0
        %1266 = vmatpush1.bf16.msra.mxu0 0
        %1267 = vmatprep.subr.bf16.mxu0 0
        %1268 = vmatpush1.bf16.msra.mxu0 0
        %1269 = vmatprep.subr.bf16.mxu0 0
        %1270 = vmatpush1.bf16.msra.mxu0 0
        %1271 = vmatprep.subr.bf16.mxu0 0
        %1272 = vmatpush1.bf16.msra.mxu0 0
        %1273 = vmatprep.subr.bf16.mxu0 0
        %1274 = vmatpush1.bf16.msra.mxu0 0
        %1275 = vmatprep.mubr.bf16.mxu0 0
        %1276 = vmatmul.mubr.bf16.gmra.mrb[0].mxu0 %v797
        %v1277 = vpop.f32.mrb[0].mxu0
        %v1278 = vadd.f32 0.0, %v1277
        %v1279 = vpop.f32.mrb[0].mxu0
        %v1280 = vpop.f32.mrb[0].mxu0
        %v1281 = vadd.f32 0.0, %v1280
        %v1282 = vpop.f32.mrb[0].mxu0
        %1283 = vmatprep.mubr.bf16.mxu0 0
        %1284 = vmatmul.mubr.bf16.gmra.mrb[0].mxu0 %v800
        %v1285 = vpop.f32.mrb[0].mxu0
        %v1286 = vadd.f32 0.0, %v1285
        %v1287 = vpop.f32.mrb[0].mxu0
        %v1288 = vpop.f32.mrb[0].mxu0
        %v1289 = vadd.f32 0.0, %v1288
        %v1290 = vpop.f32.mrb[0].mxu0
        %1291 = vdwg.mxu0
        %1292 = vmatprep.subr.bf16.mxu0 0
        %1293 = vmatpush1.bf16.msra.mxu0 %v760
        %1294 = vmatprep.subr.bf16.mxu0 0
        %1295 = vmatpush1.bf16.msra.mxu0 0
        %1296 = vmatprep.subr.bf16.mxu0 0
        %1297 = vmatpush1.bf16.msra.mxu0 0
        %1298 = vmatprep.subr.bf16.mxu0 0
        %1299 = vmatpush1.bf16.msra.mxu0 0
        %1300 = vmatprep.subr.bf16.mxu0 0
        %1301 = vmatpush1.bf16.msra.mxu0 0
        %1302 = vmatprep.subr.bf16.mxu0 0
        %1303 = vmatpush1.bf16.msra.mxu0 0
        %1304 = vmatprep.subr.bf16.mxu0 0
        %1305 = vmatpush1.bf16.msra.mxu0 0
        %1306 = vmatprep.subr.bf16.mxu0 0
        %1307 = vmatpush1.bf16.msra.mxu0 0
        %1308 = vmatprep.subr.bf16.mxu0 0
        %1309 = vmatpush1.bf16.msra.mxu0 0
        %1310 = vmatprep.subr.bf16.mxu0 0
        %1311 = vmatpush1.bf16.msra.mxu0 0
        %1312 = vmatprep.subr.bf16.mxu0 0
        %1313 = vmatpush1.bf16.msra.mxu0 0
        %1314 = vmatprep.subr.bf16.mxu0 0
        %1315 = vmatpush1.bf16.msra.mxu0 0
        %1316 = vmatprep.subr.bf16.mxu0 0
        %1317 = vmatpush1.bf16.msra.mxu0 0
        %1318 = vmatprep.subr.bf16.mxu0 0
        %1319 = vmatpush1.bf16.msra.mxu0 0
        %1320 = vmatprep.subr.bf16.mxu0 0
        %1321 = vmatpush1.bf16.msra.mxu0 0
        %1322 = vmatprep.subr.bf16.mxu0 0
        %1323 = vmatpush1.bf16.msra.mxu0 0
        %1324 = vmatprep.mubr.bf16.mxu0 0
        %1325 = vmatmul.mubr.bf16.gmra.mrb[0].mxu0 %v797
        %v1326 = vpop.f32.mrb[0].mxu0
        %v1327 = vadd.f32 0.0, %v1326
        %v1328 = vpop.f32.mrb[0].mxu0
        %v1329 = vpop.f32.mrb[0].mxu0
        %v1330 = vadd.f32 0.0, %v1329
        %v1331 = vpop.f32.mrb[0].mxu0
        %1332 = vmatprep.mubr.bf16.mxu0 0
        %1333 = vmatmul.mubr.bf16.gmra.mrb[0].mxu0 %v800
        %v1334 = vpop.f32.mrb[0].mxu0
        %v1335 = vadd.f32 0.0, %v1334
        %v1336 = vpop.f32.mrb[0].mxu0
        %v1337 = vpop.f32.mrb[0].mxu0
        %v1338 = vadd.f32 0.0, %v1337
        %v1339 = vpop.f32.mrb[0].mxu0
        %1340 = vdwg.mxu0
        %1341 = vmatprep.subr.bf16.mxu0 0
        %1342 = vmatpush1.bf16.msra.mxu0 %v764
        %1343 = vmatprep.subr.bf16.mxu0 0
        %1344 = vmatpush1.bf16.msra.mxu0 0
        %1345 = vmatprep.subr.bf16.mxu0 0
        %1346 = vmatpush1.bf16.msra.mxu0 0
        %1347 = vmatprep.subr.bf16.mxu0 0
        %1348 = vmatpush1.bf16.msra.mxu0 0
        %1349 = vmatprep.subr.bf16.mxu0 0
        %1350 = vmatpush1.bf16.msra.mxu0 0
        %1351 = vmatprep.subr.bf16.mxu0 0
        %1352 = vmatpush1.bf16.msra.mxu0 0
        %1353 = vmatprep.subr.bf16.mxu0 0
        %1354 = vmatpush1.bf16.msra.mxu0 0
        %1355 = vmatprep.subr.bf16.mxu0 0
        %1356 = vmatpush1.bf16.msra.mxu0 0
        %1357 = vmatprep.subr.bf16.mxu0 0
        %1358 = vmatpush1.bf16.msra.mxu0 0
        %1359 = vmatprep.subr.bf16.mxu0 0
        %1360 = vmatpush1.bf16.msra.mxu0 0
        %1361 = vmatprep.subr.bf16.mxu0 0
        %1362 = vmatpush1.bf16.msra.mxu0 0
        %1363 = vmatprep.subr.bf16.mxu0 0
        %1364 = vmatpush1.bf16.msra.mxu0 0
        %1365 = vmatprep.subr.bf16.mxu0 0
        %1366 = vmatpush1.bf16.msra.mxu0 0
        %1367 = vmatprep.subr.bf16.mxu0 0
        %1368 = vmatpush1.bf16.msra.mxu0 0
        %1369 = vmatprep.subr.bf16.mxu0 0
        %1370 = vmatpush1.bf16.msra.mxu0 0
        %1371 = vmatprep.subr.bf16.mxu0 0
        %1372 = vmatpush1.bf16.msra.mxu0 0
        %1373 = vmatprep.mubr.bf16.mxu0 0
        %1374 = vmatmul.mubr.bf16.gmra.mrb[0].mxu0 %v797
        %v1375 = vpop.f32.mrb[0].mxu0
        %v1376 = vadd.f32 0.0, %v1375
        %v1377 = vpop.f32.mrb[0].mxu0
        %v1378 = vpop.f32.mrb[0].mxu0
        %v1379 = vadd.f32 0.0, %v1378
        %v1380 = vpop.f32.mrb[0].mxu0
        %1381 = vmatprep.mubr.bf16.mxu0 0
        %1382 = vmatmul.mubr.bf16.gmra.mrb[0].mxu0 %v800
        %v1383 = vpop.f32.mrb[0].mxu0
        %v1384 = vadd.f32 0.0, %v1383
        %v1385 = vpop.f32.mrb[0].mxu0
        %v1386 = vpop.f32.mrb[0].mxu0
        %v1387 = vadd.f32 0.0, %v1386
        %v1388 = vpop.f32.mrb[0].mxu0
        %1389 = vdwg.mxu0
        %1390 = vmatprep.subr.bf16.mxu0 0
        %1391 = vmatpush1.bf16.msra.mxu0 %v768
        %1392 = vmatprep.subr.bf16.mxu0 0
        %1393 = vmatpush1.bf16.msra.mxu0 0
        %1394 = vmatprep.subr.bf16.mxu0 0
        %1395 = vmatpush1.bf16.msra.mxu0 0
        %1396 = vmatprep.subr.bf16.mxu0 0
        %1397 = vmatpush1.bf16.msra.mxu0 0
        %1398 = vmatprep.subr.bf16.mxu0 0
        %1399 = vmatpush1.bf16.msra.mxu0 0
        %1400 = vmatprep.subr.bf16.mxu0 0
        %1401 = vmatpush1.bf16.msra.mxu0 0
        %1402 = vmatprep.subr.bf16.mxu0 0
        %1403 = vmatpush1.bf16.msra.mxu0 0
        %1404 = vmatprep.subr.bf16.mxu0 0
        %1405 = vmatpush1.bf16.msra.mxu0 0
        %1406 = vmatprep.subr.bf16.mxu0 0
        %1407 = vmatpush1.bf16.msra.mxu0 0
        %1408 = vmatprep.subr.bf16.mxu0 0
        %1409 = vmatpush1.bf16.msra.mxu0 0
        %1410 = vmatprep.subr.bf16.mxu0 0
        %1411 = vmatpush1.bf16.msra.mxu0 0
        %1412 = vmatprep.subr.bf16.mxu0 0
        %1413 = vmatpush1.bf16.msra.mxu0 0
        %1414 = vmatprep.subr.bf16.mxu0 0
        %1415 = vmatpush1.bf16.msra.mxu0 0
        %1416 = vmatprep.subr.bf16.mxu0 0
        %1417 = vmatpush1.bf16.msra.mxu0 0
        %1418 = vmatprep.subr.bf16.mxu0 0
        %1419 = vmatpush1.bf16.msra.mxu0 0
        %1420 = vmatprep.subr.bf16.mxu0 0
        %1421 = vmatpush1.bf16.msra.mxu0 0
        %1422 = vmatprep.mubr.bf16.mxu0 0
        %1423 = vmatmul.mubr.bf16.gmra.mrb[0].mxu0 %v797
        %v1424 = vpop.f32.mrb[0].mxu0
        %v1425 = vadd.f32 0.0, %v1424
        %v1426 = vpop.f32.mrb[0].mxu0
        %v1427 = vpop.f32.mrb[0].mxu0
        %v1428 = vadd.f32 0.0, %v1427
        %v1429 = vpop.f32.mrb[0].mxu0
        %1430 = vmatprep.mubr.bf16.mxu0 0
        %1431 = vmatmul.mubr.bf16.gmra.mrb[0].mxu0 %v800
        %v1432 = vpop.f32.mrb[0].mxu0
        %v1433 = vadd.f32 0.0, %v1432
        %v1434 = vpop.f32.mrb[0].mxu0
        %v1435 = vpop.f32.mrb[0].mxu0
        %v1436 = vadd.f32 0.0, %v1435
        %v1437 = vpop.f32.mrb[0].mxu0
        %1438 = vdwg.mxu0
        %1439 = vmatprep.subr.bf16.mxu0 0
        %1440 = vmatpush1.bf16.msra.mxu0 %v772
        %1441 = vmatprep.subr.bf16.mxu0 0
        %1442 = vmatpush1.bf16.msra.mxu0 0
        %1443 = vmatprep.subr.bf16.mxu0 0
        %1444 = vmatpush1.bf16.msra.mxu0 0
        %1445 = vmatprep.subr.bf16.mxu0 0
        %1446 = vmatpush1.bf16.msra.mxu0 0
        %1447 = vmatprep.subr.bf16.mxu0 0
        %1448 = vmatpush1.bf16.msra.mxu0 0
        %1449 = vmatprep.subr.bf16.mxu0 0
        %1450 = vmatpush1.bf16.msra.mxu0 0
        %1451 = vmatprep.subr.bf16.mxu0 0
        %1452 = vmatpush1.bf16.msra.mxu0 0
        %1453 = vmatprep.subr.bf16.mxu0 0
        %1454 = vmatpush1.bf16.msra.mxu0 0
        %1455 = vmatprep.subr.bf16.mxu0 0
        %1456 = vmatpush1.bf16.msra.mxu0 0
        %1457 = vmatprep.subr.bf16.mxu0 0
        %1458 = vmatpush1.bf16.msra.mxu0 0
        %1459 = vmatprep.subr.bf16.mxu0 0
        %1460 = vmatpush1.bf16.msra.mxu0 0
        %1461 = vmatprep.subr.bf16.mxu0 0
        %1462 = vmatpush1.bf16.msra.mxu0 0
        %1463 = vmatprep.subr.bf16.mxu0 0
        %1464 = vmatpush1.bf16.msra.mxu0 0
        %1465 = vmatprep.subr.bf16.mxu0 0
        %1466 = vmatpush1.bf16.msra.mxu0 0
        %1467 = vmatprep.subr.bf16.mxu0 0
        %1468 = vmatpush1.bf16.msra.mxu0 0
        %1469 = vmatprep.subr.bf16.mxu0 0
        %1470 = vmatpush1.bf16.msra.mxu0 0
        %1471 = vmatprep.mubr.bf16.mxu0 0
        %1472 = vmatmul.mubr.bf16.gmra.mrb[0].mxu0 %v797
        %v1473 = vpop.f32.mrb[0].mxu0
        %v1474 = vadd.f32 0.0, %v1473
        %v1475 = vpop.f32.mrb[0].mxu0
        %v1476 = vpop.f32.mrb[0].mxu0
        %v1477 = vadd.f32 0.0, %v1476
        %v1478 = vpop.f32.mrb[0].mxu0
        %1479 = vmatprep.mubr.bf16.mxu0 0
        %1480 = vmatmul.mubr.bf16.gmra.mrb[0].mxu0 %v800
        %v1481 = vpop.f32.mrb[0].mxu0
        %v1482 = vadd.f32 0.0, %v1481
        %v1483 = vpop.f32.mrb[0].mxu0
        %v1484 = vpop.f32.mrb[0].mxu0
        %v1485 = vadd.f32 0.0, %v1484
        %v1486 = vpop.f32.mrb[0].mxu0
        %1487 = vdwg.mxu0
        %1488 = vmatprep.subr.bf16.mxu0 0
        %1489 = vmatpush1.bf16.msra.mxu0 %v776
        %1490 = vmatprep.subr.bf16.mxu0 0
        %1491 = vmatpush1.bf16.msra.mxu0 0
        %1492 = vmatprep.subr.bf16.mxu0 0
        %1493 = vmatpush1.bf16.msra.mxu0 0
        %1494 = vmatprep.subr.bf16.mxu0 0
        %1495 = vmatpush1.bf16.msra.mxu0 0
        %1496 = vmatprep.subr.bf16.mxu0 0
        %1497 = vmatpush1.bf16.msra.mxu0 0
        %1498 = vmatprep.subr.bf16.mxu0 0
        %1499 = vmatpush1.bf16.msra.mxu0 0
        %1500 = vmatprep.subr.bf16.mxu0 0
        %1501 = vmatpush1.bf16.msra.mxu0 0
        %1502 = vmatprep.subr.bf16.mxu0 0
        %1503 = vmatpush1.bf16.msra.mxu0 0
        %1504 = vmatprep.subr.bf16.mxu0 0
        %1505 = vmatpush1.bf16.msra.mxu0 0
        %1506 = vmatprep.subr.bf16.mxu0 0
        %1507 = vmatpush1.bf16.msra.mxu0 0
        %1508 = vmatprep.subr.bf16.mxu0 0
        %1509 = vmatpush1.bf16.msra.mxu0 0
        %1510 = vmatprep.subr.bf16.mxu0 0
        %1511 = vmatpush1.bf16.msra.mxu0 0
        %1512 = vmatprep.subr.bf16.mxu0 0
        %1513 = vmatpush1.bf16.msra.mxu0 0
        %1514 = vmatprep.subr.bf16.mxu0 0
        %1515 = vmatpush1.bf16.msra.mxu0 0
        %1516 = vmatprep.subr.bf16.mxu0 0
        %1517 = vmatpush1.bf16.msra.mxu0 0
        %1518 = vmatprep.subr.bf16.mxu0 0
        %1519 = vmatpush1.bf16.msra.mxu0 0
        %1520 = vmatprep.mubr.bf16.mxu0 0
        %1521 = vmatmul.mubr.bf16.gmra.mrb[0].mxu0 %v797
        %v1522 = vpop.f32.mrb[0].mxu0
        %v1523 = vadd.f32 0.0, %v1522
        %v1524 = vpop.f32.mrb[0].mxu0
        %v1525 = vpop.f32.mrb[0].mxu0
        %v1526 = vadd.f32 0.0, %v1525
        %v1527 = vpop.f32.mrb[0].mxu0
        %1528 = vmatprep.mubr.bf16.mxu0 0
        %1529 = vmatmul.mubr.bf16.gmra.mrb[0].mxu0 %v800
        %v1530 = vpop.f32.mrb[0].mxu0
        %v1531 = vadd.f32 0.0, %v1530
        %v1532 = vpop.f32.mrb[0].mxu0
        %v1533 = vpop.f32.mrb[0].mxu0
        %v1534 = vadd.f32 0.0, %v1533
        %v1535 = vpop.f32.mrb[0].mxu0
        %1536 = vdwg.mxu0
        %1537 = vmatprep.subr.bf16.mxu0 0
        %1538 = vmatpush1.bf16.msra.mxu0 %v780
        %1539 = vmatprep.subr.bf16.mxu0 0
        %1540 = vmatpush1.bf16.msra.mxu0 0
        %1541 = vmatprep.subr.bf16.mxu0 0
        %1542 = vmatpush1.bf16.msra.mxu0 0
        %1543 = vmatprep.subr.bf16.mxu0 0
        %1544 = vmatpush1.bf16.msra.mxu0 0
        %1545 = vmatprep.subr.bf16.mxu0 0
        %1546 = vmatpush1.bf16.msra.mxu0 0
        %1547 = vmatprep.subr.bf16.mxu0 0
        %1548 = vmatpush1.bf16.msra.mxu0 0
        %1549 = vmatprep.subr.bf16.mxu0 0
        %1550 = vmatpush1.bf16.msra.mxu0 0
        %1551 = vmatprep.subr.bf16.mxu0 0
        %1552 = vmatpush1.bf16.msra.mxu0 0
        %1553 = vmatprep.subr.bf16.mxu0 0
        %1554 = vmatpush1.bf16.msra.mxu0 0
        %1555 = vmatprep.subr.bf16.mxu0 0
        %1556 = vmatpush1.bf16.msra.mxu0 0
        %1557 = vmatprep.subr.bf16.mxu0 0
        %1558 = vmatpush1.bf16.msra.mxu0 0
        %1559 = vmatprep.subr.bf16.mxu0 0
        %1560 = vmatpush1.bf16.msra.mxu0 0
        %1561 = vmatprep.subr.bf16.mxu0 0
        %1562 = vmatpush1.bf16.msra.mxu0 0
        %1563 = vmatprep.subr.bf16.mxu0 0
        %1564 = vmatpush1.bf16.msra.mxu0 0
        %1565 = vmatprep.subr.bf16.mxu0 0
        %1566 = vmatpush1.bf16.msra.mxu0 0
        %1567 = vmatprep.subr.bf16.mxu0 0
        %1568 = vmatpush1.bf16.msra.mxu0 0
        %1569 = vmatprep.mubr.bf16.mxu0 0
        %1570 = vmatmul.mubr.bf16.gmra.mrb[0].mxu0 %v797
        %v1571 = vpop.f32.mrb[0].mxu0
        %v1572 = vadd.f32 0.0, %v1571
        %v1573 = vpop.f32.mrb[0].mxu0
        %v1574 = vpop.f32.mrb[0].mxu0
        %v1575 = vadd.f32 0.0, %v1574
        %v1576 = vpop.f32.mrb[0].mxu0
        %1577 = vmatprep.mubr.bf16.mxu0 0
        %1578 = vmatmul.mubr.bf16.gmra.mrb[0].mxu0 %v800
        %v1579 = vpop.f32.mrb[0].mxu0
        %v1580 = vadd.f32 0.0, %v1579
        %v1581 = vpop.f32.mrb[0].mxu0
        %v1582 = vpop.f32.mrb[0].mxu0
        %v1583 = vadd.f32 0.0, %v1582
        %v1584 = vpop.f32.mrb[0].mxu0
        %1585 = vdwg.mxu0
        %v1586 = vpack.c.bf16 %v840, %v837
        %v1587 = vpack.c.bf16 %v848, %v845
        %v1588 = vpack.c.bf16 %v889, %v886
        %v1589 = vpack.c.bf16 %v897, %v894
        %v1590 = vpack.c.bf16 %v938, %v935
        %v1591 = vpack.c.bf16 %v946, %v943
        %v1592 = vpack.c.bf16 %v987, %v984
        %v1593 = vpack.c.bf16 %v995, %v992
        %v1594 = vpack.c.bf16 %v1036, %v1033
        %v1595 = vpack.c.bf16 %v1044, %v1041
        %v1596 = vpack.c.bf16 %v1085, %v1082
        %v1597 = vpack.c.bf16 %v1093, %v1090
        %v1598 = vpack.c.bf16 %v1134, %v1131
        %v1599 = vpack.c.bf16 %v1142, %v1139
        %v1600 = vpack.c.bf16 %v1183, %v1180
        %v1601 = vpack.c.bf16 %v1191, %v1188
        %v1602 = vpack.c.bf16 %v1232, %v1229
        %v1603 = vpack.c.bf16 %v1240, %v1237
        %v1604 = vpack.c.bf16 %v1281, %v1278
        %v1605 = vpack.c.bf16 %v1289, %v1286
        %v1606 = vpack.c.bf16 %v1330, %v1327
        %v1607 = vpack.c.bf16 %v1338, %v1335
        %v1608 = vpack.c.bf16 %v1379, %v1376
        %v1609 = vpack.c.bf16 %v1387, %v1384
        %v1610 = vpack.c.bf16 %v1428, %v1425
        %v1611 = vpack.c.bf16 %v1436, %v1433
        %v1612 = vpack.c.bf16 %v1477, %v1474
        %v1613 = vpack.c.bf16 %v1485, %v1482
        %v1614 = vpack.c.bf16 %v1526, %v1523
        %v1615 = vpack.c.bf16 %v1534, %v1531
        %v1616 = vpack.c.bf16 %v1575, %v1572
        %v1617 = vpack.c.bf16 %v1583, %v1580
        %v1618 = vld [vmem:[%s3] sm:$0xff]
        %v1619 = vld [vmem:[%s3 + $0x8] sm:$0xff]
        %v1620 = vld [vmem:[%s3 + $0x10] sm:$0xff]
        %v1621 = vld [vmem:[%s3 + $0x18] sm:$0xff]
        %v1622 = vld [vmem:[%s4] sm:$0x3]
        %v1624 = vlaneseq
        %v1625 = vshrl.u32 %v1624, 7
        %v1626 = vsub.s32 0, %v1625
        %v1627 = vrot.slane %v1622, %v1626
        %v1628 = vlaneseq
        %v1629 = vshrl.u32 %v1628, 7
        %v1630 = vsub.s32 1, %v1629
        %v1631 = vrot.slane %v1622, %v1630
        %v1638 = vunpack.c.l.b16 %v1618
        %v1639 = vunpack.c.h.b16 %v1618
        %v1640 = vunpack.c.l.b16 %v1619
        %v1641 = vunpack.c.h.b16 %v1619
        %v1642 = vunpack.c.l.b16 %v1620
        %v1643 = vunpack.c.h.b16 %v1620
        %v1644 = vunpack.c.l.b16 %v1621
        %v1645 = vunpack.c.h.b16 %v1621
        %v1646 = vpack.c.b16 %v1640, %v1638
        %v1647 = vpack.c.b16 %v1641, %v1639
        %v1648 = vpack.c.b16 %v1644, %v1642
        %v1649 = vpack.c.b16 %v1645, %v1643
        %vm1654 = vcmask 261120
        %v1656 = vsel %vm1654, %v1586, 0
        %v1659 = vsel %vm1654, %v1587, 0
        %v1662 = vsel %vm1654, %v1588, 0
        %v1665 = vsel %vm1654, %v1589, 0
        %v1668 = vsel %vm1654, %v1590, 0
        %v1671 = vsel %vm1654, %v1591, 0
        %v1674 = vsel %vm1654, %v1592, 0
        %v1677 = vsel %vm1654, %v1593, 0
        %v1680 = vsel %vm1654, %v1594, 0
        %v1683 = vsel %vm1654, %v1595, 0
        %v1686 = vsel %vm1654, %v1596, 0
        %v1689 = vsel %vm1654, %v1597, 0
        %v1692 = vsel %vm1654, %v1598, 0
        %v1695 = vsel %vm1654, %v1599, 0
        %v1698 = vsel %vm1654, %v1600, 0
        %v1701 = vsel %vm1654, %v1601, 0
        %v1704 = vsel %vm1654, %v1602, 0
        %v1707 = vsel %vm1654, %v1603, 0
        %v1710 = vsel %vm1654, %v1604, 0
        %v1713 = vsel %vm1654, %v1605, 0
        %v1716 = vsel %vm1654, %v1606, 0
        %v1719 = vsel %vm1654, %v1607, 0
        %v1722 = vsel %vm1654, %v1608, 0
        %v1725 = vsel %vm1654, %v1609, 0
        %v1728 = vsel %vm1654, %v1610, 0
        %v1731 = vsel %vm1654, %v1611, 0
        %v1734 = vsel %vm1654, %v1612, 0
        %v1737 = vsel %vm1654, %v1613, 0
        %v1740 = vsel %vm1654, %v1614, 0
        %v1743 = vsel %vm1654, %v1615, 0
        %v1746 = vsel %vm1654, %v1616, 0
        %v1749 = vsel %vm1654, %v1617, 0
        %1751 = vmatprep.subr.bf16.mxu0 %v1647
        %1752 = vmatpush1.bf16.msra.mxu0 %v1646
        %1753 = vmatprep.subr.bf16.mxu0 %v1649
        %1754 = vmatpush1.bf16.msra.mxu0 %v1648
        %1755 = vmatprep.subr.bf16.mxu0 0
        %1756 = vmatpush1.bf16.msra.mxu0 0
        %1757 = vmatprep.subr.bf16.mxu0 0
        %1758 = vmatpush1.bf16.msra.mxu0 0
        %1759 = vmatprep.subr.bf16.mxu0 0
        %1760 = vmatpush1.bf16.msra.mxu0 0
        %1761 = vmatprep.subr.bf16.mxu0 0
        %1762 = vmatpush1.bf16.msra.mxu0 0
        %1763 = vmatprep.subr.bf16.mxu0 0
        %1764 = vmatpush1.bf16.msra.mxu0 0
        %1765 = vmatprep.subr.bf16.mxu0 0
        %1766 = vmatpush1.bf16.msra.mxu0 0
        %1767 = vmatprep.subr.bf16.mxu0 0
        %1768 = vmatpush1.bf16.msra.mxu0 0
        %1769 = vmatprep.subr.bf16.mxu0 0
        %1770 = vmatpush1.bf16.msra.mxu0 0
        %1771 = vmatprep.subr.bf16.mxu0 0
        %1772 = vmatpush1.bf16.msra.mxu0 0
        %1773 = vmatprep.subr.bf16.mxu0 0
        %1774 = vmatpush1.bf16.msra.mxu0 0
        %1775 = vmatprep.subr.bf16.mxu0 0
        %1776 = vmatpush1.bf16.msra.mxu0 0
        %1777 = vmatprep.subr.bf16.mxu0 0
        %1778 = vmatpush1.bf16.msra.mxu0 0
        %1779 = vmatprep.subr.bf16.mxu0 0
        %1780 = vmatpush1.bf16.msra.mxu0 0
        %1781 = vmatprep.subr.bf16.mxu0 0
        %1782 = vmatpush1.bf16.msra.mxu0 0
        %1783 = vmatprep.mubr.bf16.mxu0 0
        %1784 = vmatmul.mubr.bf16.gmra.mrb[0].mxu0 %v1656
        %v1785 = vpop.f32.mrb[0].mxu0
        %v1786 = vadd.f32 %v1627, %v1785
        %v1787 = vpop.f32.mrb[0].mxu0
        %v1788 = vadd.f32 %v1631, %v1787
        %v1789 = vpop.f32.mrb[0].mxu0
        %v1790 = vadd.f32 %v1627, %v1789
        %v1791 = vpop.f32.mrb[0].mxu0
        %v1792 = vadd.f32 %v1631, %v1791
        %1793 = vmatprep.mubr.bf16.mxu0 0
        %1794 = vmatmul.mubr.bf16.gmra.mrb[0].mxu0 %v1659
        %v1795 = vpop.f32.mrb[0].mxu0
        %v1796 = vadd.f32 %v1627, %v1795
        %v1797 = vpop.f32.mrb[0].mxu0
        %v1798 = vadd.f32 %v1631, %v1797
        %v1799 = vpop.f32.mrb[0].mxu0
        %v1800 = vadd.f32 %v1627, %v1799
        %v1801 = vpop.f32.mrb[0].mxu0
        %v1802 = vadd.f32 %v1631, %v1801
        %1803 = vmatprep.mubr.bf16.mxu0 0
        %1804 = vmatmul.mubr.bf16.gmra.mrb[0].mxu0 %v1662
        %v1805 = vpop.f32.mrb[0].mxu0
        %v1806 = vadd.f32 %v1627, %v1805
        %v1807 = vpop.f32.mrb[0].mxu0
        %v1808 = vadd.f32 %v1631, %v1807
        %v1809 = vpop.f32.mrb[0].mxu0
        %v1810 = vadd.f32 %v1627, %v1809
        %v1811 = vpop.f32.mrb[0].mxu0
        %v1812 = vadd.f32 %v1631, %v1811
        %1813 = vmatprep.mubr.bf16.mxu0 0
        %1814 = vmatmul.mubr.bf16.gmra.mrb[0].mxu0 %v1665
        %v1815 = vpop.f32.mrb[0].mxu0
        %v1816 = vadd.f32 %v1627, %v1815
        %v1817 = vpop.f32.mrb[0].mxu0
        %v1818 = vadd.f32 %v1631, %v1817
        %v1819 = vpop.f32.mrb[0].mxu0
        %v1820 = vadd.f32 %v1627, %v1819
        %v1821 = vpop.f32.mrb[0].mxu0
        %v1822 = vadd.f32 %v1631, %v1821
        %1823 = vmatprep.mubr.bf16.mxu0 0
        %1824 = vmatmul.mubr.bf16.gmra.mrb[0].mxu0 %v1668
        %v1825 = vpop.f32.mrb[0].mxu0
        %v1826 = vadd.f32 %v1627, %v1825
        %v1827 = vpop.f32.mrb[0].mxu0
        %v1828 = vadd.f32 %v1631, %v1827
        %v1829 = vpop.f32.mrb[0].mxu0
        %v1830 = vadd.f32 %v1627, %v1829
        %v1831 = vpop.f32.mrb[0].mxu0
        %v1832 = vadd.f32 %v1631, %v1831
        %1833 = vmatprep.mubr.bf16.mxu0 0
        %1834 = vmatmul.mubr.bf16.gmra.mrb[0].mxu0 %v1671
        %v1835 = vpop.f32.mrb[0].mxu0
        %v1836 = vadd.f32 %v1627, %v1835
        %v1837 = vpop.f32.mrb[0].mxu0
        %v1838 = vadd.f32 %v1631, %v1837
        %v1839 = vpop.f32.mrb[0].mxu0
        %v1840 = vadd.f32 %v1627, %v1839
        %v1841 = vpop.f32.mrb[0].mxu0
        %v1842 = vadd.f32 %v1631, %v1841
        %1843 = vmatprep.mubr.bf16.mxu0 0
        %1844 = vmatmul.mubr.bf16.gmra.mrb[0].mxu0 %v1674
        %v1845 = vpop.f32.mrb[0].mxu0
        %v1846 = vadd.f32 %v1627, %v1845
        %v1847 = vpop.f32.mrb[0].mxu0
        %v1848 = vadd.f32 %v1631, %v1847
        %v1849 = vpop.f32.mrb[0].mxu0
        %v1850 = vadd.f32 %v1627, %v1849
        %v1851 = vpop.f32.mrb[0].mxu0
        %v1852 = vadd.f32 %v1631, %v1851
        %1853 = vmatprep.mubr.bf16.mxu0 0
        %1854 = vmatmul.mubr.bf16.gmra.mrb[0].mxu0 %v1677
        %v1855 = vpop.f32.mrb[0].mxu0
        %v1856 = vadd.f32 %v1627, %v1855
        %v1857 = vpop.f32.mrb[0].mxu0
        %v1858 = vadd.f32 %v1631, %v1857
        %v1859 = vpop.f32.mrb[0].mxu0
        %v1860 = vadd.f32 %v1627, %v1859
        %v1861 = vpop.f32.mrb[0].mxu0
        %v1862 = vadd.f32 %v1631, %v1861
        %1863 = vmatprep.mubr.bf16.mxu0 0
        %1864 = vmatmul.mubr.bf16.gmra.mrb[0].mxu0 %v1680
        %v1865 = vpop.f32.mrb[0].mxu0
        %v1866 = vadd.f32 %v1627, %v1865
        %v1867 = vpop.f32.mrb[0].mxu0
        %v1868 = vadd.f32 %v1631, %v1867
        %v1869 = vpop.f32.mrb[0].mxu0
        %v1870 = vadd.f32 %v1627, %v1869
        %v1871 = vpop.f32.mrb[0].mxu0
        %v1872 = vadd.f32 %v1631, %v1871
        %1873 = vmatprep.mubr.bf16.mxu0 0
        %1874 = vmatmul.mubr.bf16.gmra.mrb[0].mxu0 %v1683
        %v1875 = vpop.f32.mrb[0].mxu0
        %v1876 = vadd.f32 %v1627, %v1875
        %v1877 = vpop.f32.mrb[0].mxu0
        %v1878 = vadd.f32 %v1631, %v1877
        %v1879 = vpop.f32.mrb[0].mxu0
        %v1880 = vadd.f32 %v1627, %v1879
        %v1881 = vpop.f32.mrb[0].mxu0
        %v1882 = vadd.f32 %v1631, %v1881
        %1883 = vmatprep.mubr.bf16.mxu0 0
        %1884 = vmatmul.mubr.bf16.gmra.mrb[0].mxu0 %v1686
        %v1885 = vpop.f32.mrb[0].mxu0
        %v1886 = vadd.f32 %v1627, %v1885
        %v1887 = vpop.f32.mrb[0].mxu0
        %v1888 = vadd.f32 %v1631, %v1887
        %v1889 = vpop.f32.mrb[0].mxu0
        %v1890 = vadd.f32 %v1627, %v1889
        %v1891 = vpop.f32.mrb[0].mxu0
        %v1892 = vadd.f32 %v1631, %v1891
        %1893 = vmatprep.mubr.bf16.mxu0 0
        %1894 = vmatmul.mubr.bf16.gmra.mrb[0].mxu0 %v1689
        %v1895 = vpop.f32.mrb[0].mxu0
        %v1896 = vadd.f32 %v1627, %v1895
        %v1897 = vpop.f32.mrb[0].mxu0
        %v1898 = vadd.f32 %v1631, %v1897
        %v1899 = vpop.f32.mrb[0].mxu0
        %v1900 = vadd.f32 %v1627, %v1899
        %v1901 = vpop.f32.mrb[0].mxu0
        %v1902 = vadd.f32 %v1631, %v1901
        %1903 = vmatprep.mubr.bf16.mxu0 0
        %1904 = vmatmul.mubr.bf16.gmra.mrb[0].mxu0 %v1692
        %v1905 = vpop.f32.mrb[0].mxu0
        %v1906 = vadd.f32 %v1627, %v1905
        %v1907 = vpop.f32.mrb[0].mxu0
        %v1908 = vadd.f32 %v1631, %v1907
        %v1909 = vpop.f32.mrb[0].mxu0
        %v1910 = vadd.f32 %v1627, %v1909
        %v1911 = vpop.f32.mrb[0].mxu0
        %v1912 = vadd.f32 %v1631, %v1911
        %1913 = vmatprep.mubr.bf16.mxu0 0
        %1914 = vmatmul.mubr.bf16.gmra.mrb[0].mxu0 %v1695
        %v1915 = vpop.f32.mrb[0].mxu0
        %v1916 = vadd.f32 %v1627, %v1915
        %v1917 = vpop.f32.mrb[0].mxu0
        %v1918 = vadd.f32 %v1631, %v1917
        %v1919 = vpop.f32.mrb[0].mxu0
        %v1920 = vadd.f32 %v1627, %v1919
        %v1921 = vpop.f32.mrb[0].mxu0
        %v1922 = vadd.f32 %v1631, %v1921
        %1923 = vmatprep.mubr.bf16.mxu0 0
        %1924 = vmatmul.mubr.bf16.gmra.mrb[0].mxu0 %v1698
        %v1925 = vpop.f32.mrb[0].mxu0
        %v1926 = vadd.f32 %v1627, %v1925
        %v1927 = vpop.f32.mrb[0].mxu0
        %v1928 = vadd.f32 %v1631, %v1927
        %v1929 = vpop.f32.mrb[0].mxu0
        %v1930 = vadd.f32 %v1627, %v1929
        %v1931 = vpop.f32.mrb[0].mxu0
        %v1932 = vadd.f32 %v1631, %v1931
        %1933 = vmatprep.mubr.bf16.mxu0 0
        %1934 = vmatmul.mubr.bf16.gmra.mrb[0].mxu0 %v1701
        %v1935 = vpop.f32.mrb[0].mxu0
        %v1936 = vadd.f32 %v1627, %v1935
        %v1937 = vpop.f32.mrb[0].mxu0
        %v1938 = vadd.f32 %v1631, %v1937
        %v1939 = vpop.f32.mrb[0].mxu0
        %v1940 = vadd.f32 %v1627, %v1939
        %v1941 = vpop.f32.mrb[0].mxu0
        %v1942 = vadd.f32 %v1631, %v1941
        %1943 = vmatprep.mubr.bf16.mxu0 0
        %1944 = vmatmul.mubr.bf16.gmra.mrb[0].mxu0 %v1704
        %v1945 = vpop.f32.mrb[0].mxu0
        %v1946 = vadd.f32 %v1627, %v1945
        %v1947 = vpop.f32.mrb[0].mxu0
        %v1948 = vadd.f32 %v1631, %v1947
        %v1949 = vpop.f32.mrb[0].mxu0
        %v1950 = vadd.f32 %v1627, %v1949
        %v1951 = vpop.f32.mrb[0].mxu0
        %v1952 = vadd.f32 %v1631, %v1951
        %1953 = vmatprep.mubr.bf16.mxu0 0
        %1954 = vmatmul.mubr.bf16.gmra.mrb[0].mxu0 %v1707
        %v1955 = vpop.f32.mrb[0].mxu0
        %v1956 = vadd.f32 %v1627, %v1955
        %v1957 = vpop.f32.mrb[0].mxu0
        %v1958 = vadd.f32 %v1631, %v1957
        %v1959 = vpop.f32.mrb[0].mxu0
        %v1960 = vadd.f32 %v1627, %v1959
        %v1961 = vpop.f32.mrb[0].mxu0
        %v1962 = vadd.f32 %v1631, %v1961
        %1963 = vmatprep.mubr.bf16.mxu0 0
        %1964 = vmatmul.mubr.bf16.gmra.mrb[0].mxu0 %v1710
        %v1965 = vpop.f32.mrb[0].mxu0
        %v1966 = vadd.f32 %v1627, %v1965
        %v1967 = vpop.f32.mrb[0].mxu0
        %v1968 = vadd.f32 %v1631, %v1967
        %v1969 = vpop.f32.mrb[0].mxu0
        %v1970 = vadd.f32 %v1627, %v1969
        %v1971 = vpop.f32.mrb[0].mxu0
        %v1972 = vadd.f32 %v1631, %v1971
        %1973 = vmatprep.mubr.bf16.mxu0 0
        %1974 = vmatmul.mubr.bf16.gmra.mrb[0].mxu0 %v1713
        %v1975 = vpop.f32.mrb[0].mxu0
        %v1976 = vadd.f32 %v1627, %v1975
        %v1977 = vpop.f32.mrb[0].mxu0
        %v1978 = vadd.f32 %v1631, %v1977
        %v1979 = vpop.f32.mrb[0].mxu0
        %v1980 = vadd.f32 %v1627, %v1979
        %v1981 = vpop.f32.mrb[0].mxu0
        %v1982 = vadd.f32 %v1631, %v1981
        %1983 = vmatprep.mubr.bf16.mxu0 0
        %1984 = vmatmul.mubr.bf16.gmra.mrb[0].mxu0 %v1716
        %v1985 = vpop.f32.mrb[0].mxu0
        %v1986 = vadd.f32 %v1627, %v1985
        %v1987 = vpop.f32.mrb[0].mxu0
        %v1988 = vadd.f32 %v1631, %v1987
        %v1989 = vpop.f32.mrb[0].mxu0
        %v1990 = vadd.f32 %v1627, %v1989
        %v1991 = vpop.f32.mrb[0].mxu0
        %v1992 = vadd.f32 %v1631, %v1991
        %1993 = vmatprep.mubr.bf16.mxu0 0
        %1994 = vmatmul.mubr.bf16.gmra.mrb[0].mxu0 %v1719
        %v1995 = vpop.f32.mrb[0].mxu0
        %v1996 = vadd.f32 %v1627, %v1995
        %v1997 = vpop.f32.mrb[0].mxu0
        %v1998 = vadd.f32 %v1631, %v1997
        %v1999 = vpop.f32.mrb[0].mxu0
        %v2000 = vadd.f32 %v1627, %v1999
        %v2001 = vpop.f32.mrb[0].mxu0
        %v2002 = vadd.f32 %v1631, %v2001
        %2003 = vmatprep.mubr.bf16.mxu0 0
        %2004 = vmatmul.mubr.bf16.gmra.mrb[0].mxu0 %v1722
        %v2005 = vpop.f32.mrb[0].mxu0
        %v2006 = vadd.f32 %v1627, %v2005
        %v2007 = vpop.f32.mrb[0].mxu0
        %v2008 = vadd.f32 %v1631, %v2007
        %v2009 = vpop.f32.mrb[0].mxu0
        %v2010 = vadd.f32 %v1627, %v2009
        %v2011 = vpop.f32.mrb[0].mxu0
        %v2012 = vadd.f32 %v1631, %v2011
        %2013 = vmatprep.mubr.bf16.mxu0 0
        %2014 = vmatmul.mubr.bf16.gmra.mrb[0].mxu0 %v1725
        %v2015 = vpop.f32.mrb[0].mxu0
        %v2016 = vadd.f32 %v1627, %v2015
        %v2017 = vpop.f32.mrb[0].mxu0
        %v2018 = vadd.f32 %v1631, %v2017
        %v2019 = vpop.f32.mrb[0].mxu0
        %v2020 = vadd.f32 %v1627, %v2019
        %v2021 = vpop.f32.mrb[0].mxu0
        %v2022 = vadd.f32 %v1631, %v2021
        %2023 = vmatprep.mubr.bf16.mxu0 0
        %2024 = vmatmul.mubr.bf16.gmra.mrb[0].mxu0 %v1728
        %v2025 = vpop.f32.mrb[0].mxu0
        %v2026 = vadd.f32 %v1627, %v2025
        %v2027 = vpop.f32.mrb[0].mxu0
        %v2028 = vadd.f32 %v1631, %v2027
        %v2029 = vpop.f32.mrb[0].mxu0
        %v2030 = vadd.f32 %v1627, %v2029
        %v2031 = vpop.f32.mrb[0].mxu0
        %v2032 = vadd.f32 %v1631, %v2031
        %2033 = vmatprep.mubr.bf16.mxu0 0
        %2034 = vmatmul.mubr.bf16.gmra.mrb[0].mxu0 %v1731
        %v2035 = vpop.f32.mrb[0].mxu0
        %v2036 = vadd.f32 %v1627, %v2035
        %v2037 = vpop.f32.mrb[0].mxu0
        %v2038 = vadd.f32 %v1631, %v2037
        %v2039 = vpop.f32.mrb[0].mxu0
        %v2040 = vadd.f32 %v1627, %v2039
        %v2041 = vpop.f32.mrb[0].mxu0
        %v2042 = vadd.f32 %v1631, %v2041
        %2043 = vmatprep.mubr.bf16.mxu0 0
        %2044 = vmatmul.mubr.bf16.gmra.mrb[0].mxu0 %v1734
        %v2045 = vpop.f32.mrb[0].mxu0
        %v2046 = vadd.f32 %v1627, %v2045
        %v2047 = vpop.f32.mrb[0].mxu0
        %v2048 = vadd.f32 %v1631, %v2047
        %v2049 = vpop.f32.mrb[0].mxu0
        %v2050 = vadd.f32 %v1627, %v2049
        %v2051 = vpop.f32.mrb[0].mxu0
        %v2052 = vadd.f32 %v1631, %v2051
        %2053 = vmatprep.mubr.bf16.mxu0 0
        %2054 = vmatmul.mubr.bf16.gmra.mrb[0].mxu0 %v1737
        %v2055 = vpop.f32.mrb[0].mxu0
        %v2056 = vadd.f32 %v1627, %v2055
        %v2057 = vpop.f32.mrb[0].mxu0
        %v2058 = vadd.f32 %v1631, %v2057
        %v2059 = vpop.f32.mrb[0].mxu0
        %v2060 = vadd.f32 %v1627, %v2059
        %v2061 = vpop.f32.mrb[0].mxu0
        %v2062 = vadd.f32 %v1631, %v2061
        %2063 = vmatprep.mubr.bf16.mxu0 0
        %2064 = vmatmul.mubr.bf16.gmra.mrb[0].mxu0 %v1740
        %v2065 = vpop.f32.mrb[0].mxu0
        %v2066 = vadd.f32 %v1627, %v2065
        %v2067 = vpop.f32.mrb[0].mxu0
        %v2068 = vadd.f32 %v1631, %v2067
        %v2069 = vpop.f32.mrb[0].mxu0
        %v2070 = vadd.f32 %v1627, %v2069
        %v2071 = vpop.f32.mrb[0].mxu0
        %v2072 = vadd.f32 %v1631, %v2071
        %2073 = vmatprep.mubr.bf16.mxu0 0
        %2074 = vmatmul.mubr.bf16.gmra.mrb[0].mxu0 %v1743
        %v2075 = vpop.f32.mrb[0].mxu0
        %v2076 = vadd.f32 %v1627, %v2075
        %v2077 = vpop.f32.mrb[0].mxu0
        %v2078 = vadd.f32 %v1631, %v2077
        %v2079 = vpop.f32.mrb[0].mxu0
        %v2080 = vadd.f32 %v1627, %v2079
        %v2081 = vpop.f32.mrb[0].mxu0
        %v2082 = vadd.f32 %v1631, %v2081
        %2083 = vmatprep.mubr.bf16.mxu0 0
        %2084 = vmatmul.mubr.bf16.gmra.mrb[0].mxu0 %v1746
        %v2085 = vpop.f32.mrb[0].mxu0
        %v2086 = vadd.f32 %v1627, %v2085
        %v2087 = vpop.f32.mrb[0].mxu0
        %v2088 = vadd.f32 %v1631, %v2087
        %v2089 = vpop.f32.mrb[0].mxu0
        %v2090 = vadd.f32 %v1627, %v2089
        %v2091 = vpop.f32.mrb[0].mxu0
        %v2092 = vadd.f32 %v1631, %v2091
        %2093 = vmatprep.mubr.bf16.mxu0 0
        %2094 = vmatmul.mubr.bf16.gmra.mrb[0].mxu0 %v1749
        %v2095 = vpop.f32.mrb[0].mxu0
        %v2096 = vadd.f32 %v1627, %v2095
        %v2097 = vpop.f32.mrb[0].mxu0
        %v2098 = vadd.f32 %v1631, %v2097
        %v2099 = vpop.f32.mrb[0].mxu0
        %v2100 = vadd.f32 %v1627, %v2099
        %v2101 = vpop.f32.mrb[0].mxu0
        %v2102 = vadd.f32 %v1631, %v2101
        %2103 = vdwg.mxu0
        %v2104 = vpack.c.bf16 %v1790, %v1786
        %v2105 = vpack.c.bf16 %v1792, %v1788
        %v2106 = vpack.c.bf16 %v1800, %v1796
        %v2107 = vpack.c.bf16 %v1802, %v1798
        %v2108 = vpack.c.bf16 %v1810, %v1806
        %v2109 = vpack.c.bf16 %v1812, %v1808
        %v2110 = vpack.c.bf16 %v1820, %v1816
        %v2111 = vpack.c.bf16 %v1822, %v1818
        %v2112 = vpack.c.bf16 %v1830, %v1826
        %v2113 = vpack.c.bf16 %v1832, %v1828
        %v2114 = vpack.c.bf16 %v1840, %v1836
        %v2115 = vpack.c.bf16 %v1842, %v1838
        %v2116 = vpack.c.bf16 %v1850, %v1846
        %v2117 = vpack.c.bf16 %v1852, %v1848
        %v2118 = vpack.c.bf16 %v1860, %v1856
        %v2119 = vpack.c.bf16 %v1862, %v1858
        %v2120 = vpack.c.bf16 %v1870, %v1866
        %v2121 = vpack.c.bf16 %v1872, %v1868
        %v2122 = vpack.c.bf16 %v1880, %v1876
        %v2123 = vpack.c.bf16 %v1882, %v1878
        %v2124 = vpack.c.bf16 %v1890, %v1886
        %v2125 = vpack.c.bf16 %v1892, %v1888
        %v2126 = vpack.c.bf16 %v1900, %v1896
        %v2127 = vpack.c.bf16 %v1902, %v1898
        %v2128 = vpack.c.bf16 %v1910, %v1906
        %v2129 = vpack.c.bf16 %v1912, %v1908
        %v2130 = vpack.c.bf16 %v1920, %v1916
        %v2131 = vpack.c.bf16 %v1922, %v1918
        %v2132 = vpack.c.bf16 %v1930, %v1926
        %v2133 = vpack.c.bf16 %v1932, %v1928
        %v2134 = vpack.c.bf16 %v1940, %v1936
        %v2135 = vpack.c.bf16 %v1942, %v1938
        %v2136 = vpack.c.bf16 %v1950, %v1946
        %v2137 = vpack.c.bf16 %v1952, %v1948
        %v2138 = vpack.c.bf16 %v1960, %v1956
        %v2139 = vpack.c.bf16 %v1962, %v1958
        %v2140 = vpack.c.bf16 %v1970, %v1966
        %v2141 = vpack.c.bf16 %v1972, %v1968
        %v2142 = vpack.c.bf16 %v1980, %v1976
        %v2143 = vpack.c.bf16 %v1982, %v1978
        %v2144 = vpack.c.bf16 %v1990, %v1986
        %v2145 = vpack.c.bf16 %v1992, %v1988
        %v2146 = vpack.c.bf16 %v2000, %v1996
        %v2147 = vpack.c.bf16 %v2002, %v1998
        %v2148 = vpack.c.bf16 %v2010, %v2006
        %v2149 = vpack.c.bf16 %v2012, %v2008
        %v2150 = vpack.c.bf16 %v2020, %v2016
        %v2151 = vpack.c.bf16 %v2022, %v2018
        %v2152 = vpack.c.bf16 %v2030, %v2026
        %v2153 = vpack.c.bf16 %v2032, %v2028
        %v2154 = vpack.c.bf16 %v2040, %v2036
        %v2155 = vpack.c.bf16 %v2042, %v2038
        %v2156 = vpack.c.bf16 %v2050, %v2046
        %v2157 = vpack.c.bf16 %v2052, %v2048
        %v2158 = vpack.c.bf16 %v2060, %v2056
        %v2159 = vpack.c.bf16 %v2062, %v2058
        %v2160 = vpack.c.bf16 %v2070, %v2066
        %v2161 = vpack.c.bf16 %v2072, %v2068
        %v2162 = vpack.c.bf16 %v2080, %v2076
        %v2163 = vpack.c.bf16 %v2082, %v2078
        %v2164 = vpack.c.bf16 %v2090, %v2086
        %v2165 = vpack.c.bf16 %v2092, %v2088
        %v2166 = vpack.c.bf16 %v2100, %v2096
        %v2167 = vpack.c.bf16 %v2102, %v2098
        %v2232 = vunpack.c.l.b16 %v2104
        %v2233 = vunpack.c.l.b16 %v2105
        %v2234 = vunpack.c.h.b16 %v2104
        %v2235 = vunpack.c.h.b16 %v2105
        %v2236 = vunpack.c.l.b16 %v2106
        %v2237 = vunpack.c.l.b16 %v2107
        %v2238 = vunpack.c.h.b16 %v2106
        %v2239 = vunpack.c.h.b16 %v2107
        %v2240 = vunpack.c.l.b16 %v2108
        %v2241 = vunpack.c.l.b16 %v2109
        %v2242 = vunpack.c.h.b16 %v2108
        %v2243 = vunpack.c.h.b16 %v2109
        %v2244 = vunpack.c.l.b16 %v2110
        %v2245 = vunpack.c.l.b16 %v2111
        %v2246 = vunpack.c.h.b16 %v2110
        %v2247 = vunpack.c.h.b16 %v2111
        %v2248 = vunpack.c.l.b16 %v2112
        %v2249 = vunpack.c.l.b16 %v2113
        %v2250 = vunpack.c.h.b16 %v2112
        %v2251 = vunpack.c.h.b16 %v2113
        %v2252 = vunpack.c.l.b16 %v2114
        %v2253 = vunpack.c.l.b16 %v2115
        %v2254 = vunpack.c.h.b16 %v2114
        %v2255 = vunpack.c.h.b16 %v2115
        %v2256 = vunpack.c.l.b16 %v2116
        %v2257 = vunpack.c.l.b16 %v2117
        %v2258 = vunpack.c.h.b16 %v2116
        %v2259 = vunpack.c.h.b16 %v2117
        %v2260 = vunpack.c.l.b16 %v2118
        %v2261 = vunpack.c.l.b16 %v2119
        %v2262 = vunpack.c.h.b16 %v2118
        %v2263 = vunpack.c.h.b16 %v2119
        %v2264 = vunpack.c.l.b16 %v2120
        %v2265 = vunpack.c.l.b16 %v2121
        %v2266 = vunpack.c.h.b16 %v2120
        %v2267 = vunpack.c.h.b16 %v2121
        %v2268 = vunpack.c.l.b16 %v2122
        %v2269 = vunpack.c.l.b16 %v2123
        %v2270 = vunpack.c.h.b16 %v2122
        %v2271 = vunpack.c.h.b16 %v2123
        %v2272 = vunpack.c.l.b16 %v2124
        %v2273 = vunpack.c.l.b16 %v2125
        %v2274 = vunpack.c.h.b16 %v2124
        %v2275 = vunpack.c.h.b16 %v2125
        %v2276 = vunpack.c.l.b16 %v2126
        %v2277 = vunpack.c.l.b16 %v2127
        %v2278 = vunpack.c.h.b16 %v2126
        %v2279 = vunpack.c.h.b16 %v2127
        %v2280 = vunpack.c.l.b16 %v2128
        %v2281 = vunpack.c.l.b16 %v2129
        %v2282 = vunpack.c.h.b16 %v2128
        %v2283 = vunpack.c.h.b16 %v2129
        %v2284 = vunpack.c.l.b16 %v2130
        %v2285 = vunpack.c.l.b16 %v2131
        %v2286 = vunpack.c.h.b16 %v2130
        %v2287 = vunpack.c.h.b16 %v2131
        %v2288 = vunpack.c.l.b16 %v2132
        %v2289 = vunpack.c.l.b16 %v2133
        %v2290 = vunpack.c.h.b16 %v2132
        %v2291 = vunpack.c.h.b16 %v2133
        %v2292 = vunpack.c.l.b16 %v2134
        %v2293 = vunpack.c.l.b16 %v2135
        %v2294 = vunpack.c.h.b16 %v2134
        %v2295 = vunpack.c.h.b16 %v2135
        %v2296 = vunpack.c.l.b16 %v2136
        %v2297 = vunpack.c.l.b16 %v2137
        %v2298 = vunpack.c.h.b16 %v2136
        %v2299 = vunpack.c.h.b16 %v2137
        %v2300 = vunpack.c.l.b16 %v2138
        %v2301 = vunpack.c.l.b16 %v2139
        %v2302 = vunpack.c.h.b16 %v2138
        %v2303 = vunpack.c.h.b16 %v2139
        %v2304 = vunpack.c.l.b16 %v2140
        %v2305 = vunpack.c.l.b16 %v2141
        %v2306 = vunpack.c.h.b16 %v2140
        %v2307 = vunpack.c.h.b16 %v2141
        %v2308 = vunpack.c.l.b16 %v2142
        %v2309 = vunpack.c.l.b16 %v2143
        %v2310 = vunpack.c.h.b16 %v2142
        %v2311 = vunpack.c.h.b16 %v2143
        %v2312 = vunpack.c.l.b16 %v2144
        %v2313 = vunpack.c.l.b16 %v2145
        %v2314 = vunpack.c.h.b16 %v2144
        %v2315 = vunpack.c.h.b16 %v2145
        %v2316 = vunpack.c.l.b16 %v2146
        %v2317 = vunpack.c.l.b16 %v2147
        %v2318 = vunpack.c.h.b16 %v2146
        %v2319 = vunpack.c.h.b16 %v2147
        %v2320 = vunpack.c.l.b16 %v2148
        %v2321 = vunpack.c.l.b16 %v2149
        %v2322 = vunpack.c.h.b16 %v2148
        %v2323 = vunpack.c.h.b16 %v2149
        %v2324 = vunpack.c.l.b16 %v2150
        %v2325 = vunpack.c.l.b16 %v2151
        %v2326 = vunpack.c.h.b16 %v2150
        %v2327 = vunpack.c.h.b16 %v2151
        %v2328 = vunpack.c.l.b16 %v2152
        %v2329 = vunpack.c.l.b16 %v2153
        %v2330 = vunpack.c.h.b16 %v2152
        %v2331 = vunpack.c.h.b16 %v2153
        %v2332 = vunpack.c.l.b16 %v2154
        %v2333 = vunpack.c.l.b16 %v2155
        %v2334 = vunpack.c.h.b16 %v2154
        %v2335 = vunpack.c.h.b16 %v2155
        %v2336 = vunpack.c.l.b16 %v2156
        %v2337 = vunpack.c.l.b16 %v2157
        %v2338 = vunpack.c.h.b16 %v2156
        %v2339 = vunpack.c.h.b16 %v2157
        %v2340 = vunpack.c.l.b16 %v2158
        %v2341 = vunpack.c.l.b16 %v2159
        %v2342 = vunpack.c.h.b16 %v2158
        %v2343 = vunpack.c.h.b16 %v2159
        %v2344 = vunpack.c.l.b16 %v2160
        %v2345 = vunpack.c.l.b16 %v2161
        %v2346 = vunpack.c.h.b16 %v2160
        %v2347 = vunpack.c.h.b16 %v2161
        %v2348 = vunpack.c.l.b16 %v2162
        %v2349 = vunpack.c.l.b16 %v2163
        %v2350 = vunpack.c.h.b16 %v2162
        %v2351 = vunpack.c.h.b16 %v2163
        %v2352 = vunpack.c.l.b16 %v2164
        %v2353 = vunpack.c.l.b16 %v2165
        %v2354 = vunpack.c.h.b16 %v2164
        %v2355 = vunpack.c.h.b16 %v2165
        %v2356 = vunpack.c.l.b16 %v2166
        %v2357 = vunpack.c.l.b16 %v2167
        %v2358 = vunpack.c.h.b16 %v2166
        %v2359 = vunpack.c.h.b16 %v2167
        %v2360 = vpack.c.b16 %v2233, %v2232
        %v2361 = vpack.c.b16 %v2235, %v2234
        %v2362 = vpack.c.b16 %v2237, %v2236
        %v2363 = vpack.c.b16 %v2239, %v2238
        %v2364 = vpack.c.b16 %v2241, %v2240
        %v2365 = vpack.c.b16 %v2243, %v2242
        %v2366 = vpack.c.b16 %v2245, %v2244
        %v2367 = vpack.c.b16 %v2247, %v2246
        %v2368 = vpack.c.b16 %v2249, %v2248
        %v2369 = vpack.c.b16 %v2251, %v2250
        %v2370 = vpack.c.b16 %v2253, %v2252
        %v2371 = vpack.c.b16 %v2255, %v2254
        %v2372 = vpack.c.b16 %v2257, %v2256
        %v2373 = vpack.c.b16 %v2259, %v2258
        %v2374 = vpack.c.b16 %v2261, %v2260
        %v2375 = vpack.c.b16 %v2263, %v2262
        %v2376 = vpack.c.b16 %v2265, %v2264
        %v2377 = vpack.c.b16 %v2267, %v2266
        %v2378 = vpack.c.b16 %v2269, %v2268
        %v2379 = vpack.c.b16 %v2271, %v2270
        %v2380 = vpack.c.b16 %v2273, %v2272
        %v2381 = vpack.c.b16 %v2275, %v2274
        %v2382 = vpack.c.b16 %v2277, %v2276
        %v2383 = vpack.c.b16 %v2279, %v2278
        %v2384 = vpack.c.b16 %v2281, %v2280
        %v2385 = vpack.c.b16 %v2283, %v2282
        %v2386 = vpack.c.b16 %v2285, %v2284
        %v2387 = vpack.c.b16 %v2287, %v2286
        %v2388 = vpack.c.b16 %v2289, %v2288
        %v2389 = vpack.c.b16 %v2291, %v2290
        %v2390 = vpack.c.b16 %v2293, %v2292
        %v2391 = vpack.c.b16 %v2295, %v2294
        %v2392 = vpack.c.b16 %v2297, %v2296
        %v2393 = vpack.c.b16 %v2299, %v2298
        %v2394 = vpack.c.b16 %v2301, %v2300
        %v2395 = vpack.c.b16 %v2303, %v2302
        %v2396 = vpack.c.b16 %v2305, %v2304
        %v2397 = vpack.c.b16 %v2307, %v2306
        %v2398 = vpack.c.b16 %v2309, %v2308
        %v2399 = vpack.c.b16 %v2311, %v2310
        %v2400 = vpack.c.b16 %v2313, %v2312
        %v2401 = vpack.c.b16 %v2315, %v2314
        %v2402 = vpack.c.b16 %v2317, %v2316
        %v2403 = vpack.c.b16 %v2319, %v2318
        %v2404 = vpack.c.b16 %v2321, %v2320
        %v2405 = vpack.c.b16 %v2323, %v2322
        %v2406 = vpack.c.b16 %v2325, %v2324
        %v2407 = vpack.c.b16 %v2327, %v2326
        %v2408 = vpack.c.b16 %v2329, %v2328
        %v2409 = vpack.c.b16 %v2331, %v2330
        %v2410 = vpack.c.b16 %v2333, %v2332
        %v2411 = vpack.c.b16 %v2335, %v2334
        %v2412 = vpack.c.b16 %v2337, %v2336
        %v2413 = vpack.c.b16 %v2339, %v2338
        %v2414 = vpack.c.b16 %v2341, %v2340
        %v2415 = vpack.c.b16 %v2343, %v2342
        %v2416 = vpack.c.b16 %v2345, %v2344
        %v2417 = vpack.c.b16 %v2347, %v2346
        %v2418 = vpack.c.b16 %v2349, %v2348
        %v2419 = vpack.c.b16 %v2351, %v2350
        %v2420 = vpack.c.b16 %v2353, %v2352
        %v2421 = vpack.c.b16 %v2355, %v2354
        %v2422 = vpack.c.b16 %v2357, %v2356
        %v2423 = vpack.c.b16 %v2359, %v2358
        %2488 = vst [vmem:[%s272] sm:$0xff] %v2360
        %2489 = vst [vmem:[%s272 + $0x8] sm:$0xff] %v2361
        %2490 = vst [vmem:[%s272 + $0x10] sm:$0xff] %v2362
        %2491 = vst [vmem:[%s272 + $0x18] sm:$0xff] %v2363
        %2492 = vst [vmem:[%s272 + $0x20] sm:$0xff] %v2364
        %2493 = vst [vmem:[%s272 + $0x28] sm:$0xff] %v2365
        %2494 = vst [vmem:[%s272 + $0x30] sm:$0xff] %v2366
        %2495 = vst [vmem:[%s272 + $0x38] sm:$0xff] %v2367
        %2496 = vst [vmem:[%s272 + $0x40] sm:$0xff] %v2368
        %2497 = vst [vmem:[%s272 + $0x48] sm:$0xff] %v2369
        %2498 = vst [vmem:[%s272 + $0x50] sm:$0xff] %v2370
        %2499 = vst [vmem:[%s272 + $0x58] sm:$0xff] %v2371
        %2500 = vst [vmem:[%s272 + $0x60] sm:$0xff] %v2372
        %2501 = vst [vmem:[%s272 + $0x68] sm:$0xff] %v2373
        %2502 = vst [vmem:[%s272 + $0x70] sm:$0xff] %v2374
        %2503 = vst [vmem:[%s272 + $0x78] sm:$0xff] %v2375
        %2504 = vst [vmem:[%s272 + $0x80] sm:$0xff] %v2376
        %2505 = vst [vmem:[%s272 + $0x88] sm:$0xff] %v2377
        %2506 = vst [vmem:[%s272 + $0x90] sm:$0xff] %v2378
        %2507 = vst [vmem:[%s272 + $0x98] sm:$0xff] %v2379
        %2508 = vst [vmem:[%s272 + $0xa0] sm:$0xff] %v2380
        %2509 = vst [vmem:[%s272 + $0xa8] sm:$0xff] %v2381
        %2510 = vst [vmem:[%s272 + $0xb0] sm:$0xff] %v2382
        %2511 = vst [vmem:[%s272 + $0xb8] sm:$0xff] %v2383
        %2512 = vst [vmem:[%s272 + $0xc0] sm:$0xff] %v2384
        %2513 = vst [vmem:[%s272 + $0xc8] sm:$0xff] %v2385
        %2514 = vst [vmem:[%s272 + $0xd0] sm:$0xff] %v2386
        %2515 = vst [vmem:[%s272 + $0xd8] sm:$0xff] %v2387
        %2516 = vst [vmem:[%s272 + $0xe0] sm:$0xff] %v2388
        %2517 = vst [vmem:[%s272 + $0xe8] sm:$0xff] %v2389
        %2518 = vst [vmem:[%s272 + $0xf0] sm:$0xff] %v2390
        %2519 = vst [vmem:[%s272 + $0xf8] sm:$0xff] %v2391
        %2520 = vst [vmem:[%s272 + $0x100] sm:$0xff] %v2392
        %2521 = vst [vmem:[%s272 + $0x108] sm:$0xff] %v2393
        %2522 = vst [vmem:[%s272 + $0x110] sm:$0xff] %v2394
        %2523 = vst [vmem:[%s272 + $0x118] sm:$0xff] %v2395
        %2524 = vst [vmem:[%s272 + $0x120] sm:$0xff] %v2396
        %2525 = vst [vmem:[%s272 + $0x128] sm:$0xff] %v2397
        %2526 = vst [vmem:[%s272 + $0x130] sm:$0xff] %v2398
        %2527 = vst [vmem:[%s272 + $0x138] sm:$0xff] %v2399
        %2528 = vst [vmem:[%s272 + $0x140] sm:$0xff] %v2400
        %2529 = vst [vmem:[%s272 + $0x148] sm:$0xff] %v2401
        %2530 = vst [vmem:[%s272 + $0x150] sm:$0xff] %v2402
        %2531 = vst [vmem:[%s272 + $0x158] sm:$0xff] %v2403
        %2532 = vst [vmem:[%s272 + $0x160] sm:$0xff] %v2404
        %2533 = vst [vmem:[%s272 + $0x168] sm:$0xff] %v2405
        %2534 = vst [vmem:[%s272 + $0x170] sm:$0xff] %v2406
        %2535 = vst [vmem:[%s272 + $0x178] sm:$0xff] %v2407
        %2536 = vst [vmem:[%s272 + $0x180] sm:$0xff] %v2408
        %2537 = vst [vmem:[%s272 + $0x188] sm:$0xff] %v2409
        %2538 = vst [vmem:[%s272 + $0x190] sm:$0xff] %v2410
        %2539 = vst [vmem:[%s272 + $0x198] sm:$0xff] %v2411
        %2540 = vst [vmem:[%s272 + $0x1a0] sm:$0xff] %v2412
        %2541 = vst [vmem:[%s272 + $0x1a8] sm:$0xff] %v2413
        %2542 = vst [vmem:[%s272 + $0x1b0] sm:$0xff] %v2414
        %2543 = vst [vmem:[%s272 + $0x1b8] sm:$0xff] %v2415
        %2544 = vst [vmem:[%s272 + $0x1c0] sm:$0xff] %v2416
        %2545 = vst [vmem:[%s272 + $0x1c8] sm:$0xff] %v2417
        %2546 = vst [vmem:[%s272 + $0x1d0] sm:$0xff] %v2418
        %2547 = vst [vmem:[%s272 + $0x1d8] sm:$0xff] %v2419
        %2548 = vst [vmem:[%s272 + $0x1e0] sm:$0xff] %v2420
        %2549 = vst [vmem:[%s272 + $0x1e8] sm:$0xff] %v2421
        %2550 = vst [vmem:[%s272 + $0x1f0] sm:$0xff] %v2422
        %2551 = vst [vmem:[%s272 + $0x1f8] sm:$0xff] %v2423
        %s2552 = sand.u32 %s159, 1
        %s2553 = scalar_lea.sflag [#allocation4], %s2552
        %s2554 = sand.u32 %s159, 1
        %s2555 = smul.addr %s2554, 512
        %s2556 = scalar_lea.vmem [#allocation5], %s2555
        // Predicated region
        $region45: #{tpu_custom_call.1} parent=39 // pred_check
          %p2557 = pneg %p169
        $region46: #{tpu_custom_call.1} parent=39 // pred_check_branch
          %2559 = sbr.rel (%p2557) target = $region48
        $region47: #{tpu_custom_call.1} parent=39 // pred_region
          %s2560 = smul.u32 64, %s27
          %s2562 = ssub.s32 8192, 8192
          %2563 = vsyncadd %s2553, %s2562
          %s2564 = smul.addr %s2560, 2
          %s2565 = smul.addr %s26, 256
          %s2566 = sadd.s32 %s2564, %s2565
          %s2567 = smul.addr %s2566, 64
          %s2568 = scalar_lea.hbm %s5, %s2567
          %s2569 = sshll.u32 %s2556, 4
          %s2570 = int_to_ptr.vmem [resolvable:$true] %s2569
          %2575 = dma.vmem_to_hbm [thread:$0]  %s2570, 8192, %s2568, %s2553, 128, 128, 8
        $region48: #{tpu_custom_call.1} parent=39 // pred_fallthru
          _
      $region40: #{tpu_custom_call.1} parent=5 // pred_fallthru
        _
      %p2576 = scmp.le.s32.totalorder 2, %s17
      // Predicated region
      $region49: #{tpu_custom_call.1} parent=5 // pred_check
        %p2577 = pneg %p2576
      $region50: #{tpu_custom_call.1} parent=5 // pred_check_branch
        %2579 = sbr.rel (%p2577) target = $region52
      $region51: #{tpu_custom_call.1} parent=5 // pred_region
        %s2580 = ssub.s32 %s17, 2
        // Predicated region
        $region53: #{tpu_custom_call.1} parent=51 // pred_check
          %p2581 = pneg %p175
        $region54: #{tpu_custom_call.1} parent=51 // pred_check_branch
          %2583 = sbr.rel (%p2581) target = $region56
        $region55: #{tpu_custom_call.1} parent=51 // pred_region
          %s2584 = sand.u32 %s160, 1
          %s2585 = scalar_lea.sflag [#allocation4], %s2584
          %s2586 = sand.u32 %s160, 1
          %s2587 = smul.addr %s2586, 512
          %s2588 = scalar_lea.vmem [#allocation5], %s2587
          %2589 = dma.done %s2585, 8192
        $region56: #{tpu_custom_call.1} parent=51 // pred_fallthru
          _
      $region52: #{tpu_custom_call.1} parent=5 // pred_fallthru
        _
    $region6: #{tpu_custom_call.1} parent=1 // loop_footer
      %s21 = sadd.s32 1, %s17
    $region7: #{tpu_custom_call.1} parent=1 // loop_footer_branch
      %16 = sbr.rel target = $region3
    $region8: #{tpu_custom_call.1} parent=1 // loop_exit
      _
    %2590 = vsyncpa [#allocation3], 1
    %s2591 = scalar_lea.sflag [#allocation3], 1
    %2592 = vsyncpa %s2591, 1
    %2593 = vsyncpa [#allocation4], 1
    %s2594 = scalar_lea.sflag [#allocation4], 1
    %2595 = vsyncpa %s2594, 1

</llo_original>
